<compile_context>
chip_gen: v6e
topology: v6e:2x2x1
jax: 0.10.0
libtpu: 0.0.40
codegen_flags: <defaults>
</compile_context>

<pallas_src>
import functools

import jax
import jax.numpy as jnp
from jax.experimental import pallas as pl
from jax.experimental.pallas import tpu as pltpu


# ----------------------------------------------------------------------------
# Kernel
# ----------------------------------------------------------------------------
def lc_attention_kernel(x_ref, xlast_ref, wq_ref, wk_ref, wv_ref,
                        wout_ref, bout_ref, mask_ref, mask_t_ref, o_ref,
                        *, seq_valid, approx_recip):
    bt, n, dim = x_ref.shape
    inner_dim = wk_ref.shape[1]
    heads = mask_ref.shape[1]
    cd = wq_ref.dtype                                   # compute dtype (bf16 or f32)

    # n is padded host-side to the sublane packing of x.dtype, so this reshape
    # (and the k/p/attn/v reshapes below, all on f32 with n % 8 == 0) are
    # layout-free — no VMEM relayout copies per grid step.
    x_flat = x_ref[...].reshape(bt * n, dim).astype(cd)        # all tokens -> K/V
    x_last = xlast_ref[0].astype(cd)                           # (bt, dim) -> Q (lane-dense DMA)

    # Q / K projections on the MXU with f32 accumulation. The softmax scale is
    # already folded into W_q host-side. V is deferred until after the softmax
    # to cut peak VMEM pressure.
    q = jnp.dot(x_last, wq_ref[...], preferred_element_type=jnp.float32)   # (bt, ID)
    k = jnp.dot(x_flat, wk_ref[...], preferred_element_type=jnp.float32)   # (bt*n, ID)
    k = k.reshape(bt, n, inner_dim)

    # Per-head dot(q_last, k) without reshuffling heads: elementwise q*k, then
    # sum each head's feature block via the 0/1 head-indicator matmul
    # (compute-dtype operands — exact mask — f32 accumulation).
    p = (k * q[:, None, :]).reshape(bt * n, inner_dim).astype(cd)
    dots = jnp.dot(p, mask_ref[...],
                   preferred_element_type=jnp.float32).reshape(bt, n, heads)

    if seq_valid < n:
        # Mask padded key positions (static condition; cheap VPU work).
        key_pos = jax.lax.broadcasted_iota(jnp.int32, dots.shape, 1)
        dots = jnp.where(key_pos < seq_valid, dots, -1e30)

    # Softmax over the key axis (axis=1), per (batch, head) — f32 math.
    m = jnp.max(dots, axis=1, keepdims=True)            # (bt, 1, H)
    e = jnp.exp(dots - m)
    s = jnp.sum(e, axis=1, keepdims=True)
    if approx_recip:
        attn = e * pl.reciprocal(s, approx=True)        # EUP slot; ~2^-12 rel err
    else:
        attn = e / s                                    # exact path for f32 tests

    # Broadcast per-head attention weights back onto feature lanes.
    attn_full = jnp.dot(attn.reshape(bt * n, heads).astype(cd), mask_t_ref[...],
                        preferred_element_type=jnp.float32).reshape(bt, n, inner_dim)

    # Deferred V projection.
    v = jnp.dot(x_flat, wv_ref[...],
                preferred_element_type=jnp.float32).reshape(bt, n, inner_dim)
    out_vec = jnp.sum(attn_full * v, axis=1)            # (bt, ID)

    # Output projection + bias; dim_pad (>= dim, multiple of 128) lanes for a
    # lane-dense store.
    out = jnp.dot(out_vec.astype(cd), wout_ref[...],
                  preferred_element_type=jnp.float32) + bout_ref[...]
    o_ref[0] = out.astype(o_ref.dtype)


# ----------------------------------------------------------------------------
# Host-side helpers
# ----------------------------------------------------------------------------
def _vmem_budget():
    """(vmem_limit_bytes, row_cap) — generation-aware via get_tpu_info."""
    cap = None
    try:
        info = pltpu.get_tpu_info()
        cap = int(getattr(info, "vmem_capacity_bytes", 0)) or None
    except Exception:
        cap = None
    if cap is None:                                   # unknown part: safe everywhere
        return 48 * 1024 * 1024, 512
    limit = min(cap * 3 // 4, 100 * 1024 * 1024)      # ~96 MiB (v5e/v6e), ~48 MiB (v7x)
    row_cap = 1024 if cap >= 96 * 1024 * 1024 else 512
    return int(limit), int(row_cap)


def _pick_batch_tile(b, n_pad, dim, dim_pad, inner_dim, heads,
                     x_itemsize, w_itemsize, vmem_limit, row_cap):
    """Largest bt fitting the VMEM budget / row cap while keeping >= 4 grid steps."""
    # Single-buffered resident weights / masks / bias.
    fixed = ((3 * dim * inner_dim + inner_dim * dim_pad + 2 * inner_dim * heads)
             * w_itemsize + dim_pad * 4)
    # Per-batch-element working set: double-buffered x / x_last / out tiles plus
    # ~3 live f32 (n, inner_dim) intermediates (k, p|attn_full, v).
    per_b = (2 * n_pad * dim * x_itemsize + 2 * dim * x_itemsize
             + 2 * dim_pad * x_itemsize + 3 * n_pad * inner_dim * 4)
    budget = int(vmem_limit * 0.7) - fixed                     # headroom for compiler scratch
    bt_vmem = max(1, budget // per_b) if budget >= per_b else 1
    bt_rows = max(1, row_cap // max(n_pad, 1))
    bt_steps = max(1, b // 4) if b >= 4 else 1                 # >= 4 steps (2 / TC on v7x)
    return int(max(1, min(bt_vmem, bt_rows, bt_steps, b)))


def _choose_tiling(b, bt_cap):
    """Prefer an exact divisor of b near the cap; otherwise pad the batch."""
    best = 1
    for cand in range(1, min(bt_cap, b) + 1):
        if b % cand == 0:
            best = cand
    if 2 * best >= bt_cap:           # close enough: avoid an HBM pad copy of x
        return best, b
    return bt_cap, pl.cdiv(b, bt_cap) * bt_cap


# ----------------------------------------------------------------------------
# Public wrapper
# ----------------------------------------------------------------------------
def lc_attention(x, w_qkv, w_out, b_out, *, heads, dim_head,
                 compute_dtype=jnp.bfloat16, batch_tile=None):
    b, n, dim = x.shape
    inner_dim = heads * dim_head
    scale = float(dim_head) ** -0.5
    cd = jnp.dtype(compute_dtype)
    LANE = 128

    # ---- parameters (host side) ---------------------------------------------
    # Split the fused QKV weight; fold the softmax scale into W_q (exact in f32
    # when scale is a power of two; bf16-rounded on the fast path).
    w_q = (w_qkv[:, 0 * inner_dim:1 * inner_dim] * scale).astype(cd)
    w_k = w_qkv[:, 1 * inner_dim:2 * inner_dim].astype(cd)
    w_v = w_qkv[:, 2 * inner_dim:3 * inner_dim].astype(cd)

    # Pad the output feature axis to a multiple of 128 -> lane-dense stores.
    dim_pad = pl.cdiv(dim, LANE) * LANE
    w_o = w_out.astype(cd)
    b_o = b_out.reshape(1, dim).astype(jnp.float32)
    if dim_pad != dim:
        w_o = jnp.pad(w_o, ((0, 0), (0, dim_pad - dim)))
        b_o = jnp.pad(b_o, ((0, 0), (0, dim_pad - dim)))

    # 0/1 head-indicator matrices, stored in the compute dtype (exact in bf16).
    # The transpose is passed separately to avoid an in-kernel XLU transpose.
    head_mask = (jnp.arange(inner_dim)[:, None] // dim_head
                 == jnp.arange(heads)[None, :]).astype(cd)            # (ID, H)
    head_mask_t = head_mask.T                                         # (H, ID)

    # ---- activations ----------------------------------------------------------
    x_last = x[:, n - 1, :]                       # true last token, pre-padding

    # Pad seq to the sublane packing of x.dtype so in-kernel reshapes are
    # layout-free (8 for f32, 16 for bf16 inputs).
    pack = max(8, 32 // jnp.dtype(x.dtype).itemsize)
    n_pad = pl.cdiv(n, pack) * pack
    x_in = x if n_pad == n else jnp.pad(x, ((0, 0), (0, n_pad - n), (0, 0)))

    # ---- tiling / VMEM budget -------------------------------------------------
    vmem_limit, row_cap = _vmem_budget()
    if batch_tile is None:
        bt_cap = _pick_batch_tile(b, n_pad, dim, dim_pad, inner_dim, heads,
                                  x.dtype.itemsize, cd.itemsize,
                                  vmem_limit, row_cap)
        bt, b_pad = _choose_tiling(b, bt_cap)
    else:
        bt = int(batch_tile)
        b_pad = pl.cdiv(b, bt) * bt

    if b_pad != b:
        x_in = jnp.pad(x_in, ((0, b_pad - b), (0, 0), (0, 0)))
        x_last = jnp.pad(x_last, ((0, b_pad - b), (0, 0)))
    num_tiles = b_pad // bt
    # Package x_last as (num_tiles, bt, dim) so its (1, bt, dim) block always
    # equals the trailing array dims — valid for any bt (no (8,128) issues).
    x_last = x_last.reshape(num_tiles, bt, dim)

    use_bf16 = cd == jnp.dtype(jnp.bfloat16)
    kernel = functools.partial(lc_attention_kernel,
                               seq_valid=n, approx_recip=use_bf16)

    flops = (2 * b_pad * n_pad * dim * 2 * inner_dim       # K, V projections
             + 2 * b_pad * dim * inner_dim                  # Q (last token only)
             + 2 * 2 * b_pad * n_pad * inner_dim * heads    # head-mask matmuls
             + 2 * b_pad * inner_dim * dim_pad)             # output projection
    bytes_accessed = (x_in.size * x_in.dtype.itemsize
                      + x_last.size * x_last.dtype.itemsize
                      + (3 * dim * inner_dim + inner_dim * dim_pad) * cd.itemsize
                      + dim_pad * 4
                      + b_pad * dim_pad * x.dtype.itemsize)
    cost = pl.CostEstimate(flops=int(flops),
                           transcendentals=int(b_pad * n_pad * heads),
                           bytes_accessed=int(bytes_accessed))

    def _call(single_buffer_weights):
        def resident(shape):
            zeros = (0,) * len(shape)
            if single_buffer_weights:
                return pl.BlockSpec(shape, lambda i: zeros,
                                    pipeline_mode=pl.Buffered(1))
            return pl.BlockSpec(shape, lambda i: zeros)

        return pl.pallas_call(
            kernel,
            out_shape=jax.ShapeDtypeStruct((num_tiles, bt, dim_pad), x.dtype),
            grid=(num_tiles,),
            in_specs=[
                pl.BlockSpec((bt, n_pad, dim), lambda i: (i, 0, 0)),   # x tile
                pl.BlockSpec((1, bt, dim), lambda i: (i, 0, 0)),       # last-token rows
                resident((dim, inner_dim)),                            # W_q (scaled)
                resident((dim, inner_dim)),                            # W_k
                resident((dim, inner_dim)),                            # W_v
                resident((inner_dim, dim_pad)),                        # W_out (padded)
                resident((1, dim_pad)),                                # b_out (padded)
                resident((inner_dim, heads)),                          # head mask
                resident((heads, inner_dim)),                          # head mask^T
            ],
            out_specs=pl.BlockSpec((1, bt, dim_pad), lambda i: (i, 0, 0)),
            compiler_params=pltpu.CompilerParams(
                dimension_semantics=("parallel",),
                vmem_limit_bytes=int(vmem_limit)),
            cost_estimate=cost,
        )(x_in, x_last, w_q, w_k, w_v, w_o, b_o, head_mask, head_mask_t)

    try:
        out3d = _call(True)
    except Exception:
        # Single-buffered resident weights (pl.Buffered(1)) unsupported on this
        # jax version — fall back to default double-buffering.
        out3d = _call(False)

    return out3d.reshape(b_pad, 1, dim_pad)[:b, :, :dim]


# ----------------------------------------------------------------------------
# Pure-JAX reference (mirrors the PyTorch forward exactly)
# ----------------------------------------------------------------------------
def lc_attention_reference(x, w_qkv, w_out, b_out, *, heads, dim_head):
    b, n, dim = x.shape
    inner_dim = heads * dim_head
    qkv = x @ w_qkv
    q, k, v = jnp.split(qkv, 3, axis=-1)

    def to_heads(t):
        return t.reshape(b, n, heads, dim_head).transpose(0, 2, 1, 3)

    q, k, v = map(to_heads, (q, k, v))             # (b, h, n, d)
    q = q[:, :, -1:, :]                            # (b, h, 1, d)
    dots = jnp.einsum('bhid,bhjd->bhij', q, k) * (float(dim_head) ** -0.5)
    attn = jax.nn.softmax(dots, axis=-1)
    out = jnp.einsum('bhij,bhjd->bhid', attn, v)   # (b, h, 1, d)
    out = out.transpose(0, 2, 1, 3).reshape(b, 1, inner_dim)
    return out @ w_out + b_out


if __name__ == "__main__":
    # Small shapes consistent with the module's forward.
    batch, seq, dim = 2, 8, 32
    heads, dim_head = 4, 16
    inner_dim = heads * dim_head   # 64 != dim -> project_out = True

    key = jax.random.PRNGKey(0)
    kx, kq, kw, kb, kx3 = jax.random.split(key, 5)

    x = jax.random.normal(kx, (batch, seq, dim), dtype=jnp.float32)
    # Deterministic synthetic parameters (stored as (in, out), i.e. pre-transposed).
    w_qkv = jax.random.normal(kq, (dim, 3 * inner_dim), dtype=jnp.float32) * 0.1
    w_out = jax.random.normal(kw, (inner_dim, dim), dtype=jnp.float32) * 0.1
    b_out = jax.random.normal(kb, (1, dim), dtype=jnp.float32) * 0.1
    # Dropout(p=0.0) is the identity -> nothing to implement.

    ref = lc_attention_reference(x, w_qkv, w_out, b_out,
                                 heads=heads, dim_head=dim_head)

    # 1) Exact-precision path (f32 MXU operands) — tight tolerance vs. f32 reference.
    out_f32 = jax.block_until_ready(
        lc_attention(x, w_qkv, w_out, b_out, heads=heads, dim_head=dim_head,
                     compute_dtype=jnp.float32))
    assert out_f32.shape == (batch, 1, dim), out_f32.shape
    err_f32 = float(jnp.max(jnp.abs(out_f32 - ref)))
    assert jnp.allclose(out_f32, ref, atol=2e-5, rtol=2e-5), err_f32

    # 2) Fast path (bf16 MXU operands incl. mask matmuls, f32 accumulation & softmax).
    out_bf16 = jax.block_until_ready(
        lc_attention(x, w_qkv, w_out, b_out, heads=heads, dim_head=dim_head,
                     compute_dtype=jnp.bfloat16))
    assert out_bf16.shape == (batch, 1, dim), out_bf16.shape
    err_bf16 = float(jnp.max(jnp.abs(out_bf16 - ref)))
    assert jnp.allclose(out_bf16, ref, atol=4e-2, rtol=4e-2), err_bf16

    # 3) Padding paths: non-sublane-aligned seq + a batch tile that does not
    #    divide the batch (exercises key masking and batch padding).
    b3, n3 = 3, 7
    x3 = jax.random.normal(kx3, (b3, n3, dim), dtype=jnp.float32)
    ref3 = lc_attention_reference(x3, w_qkv, w_out, b_out,
                                  heads=heads, dim_head=dim_head)
    out3 = jax.block_until_ready(
        lc_attention(x3, w_qkv, w_out, b_out, heads=heads, dim_head=dim_head,
                     compute_dtype=jnp.float32, batch_tile=2))
    assert out3.shape == (b3, 1, dim), out3.shape
    err3 = float(jnp.max(jnp.abs(out3 - ref3)))
    assert jnp.allclose(out3, ref3, atol=2e-5, rtol=2e-5), err3

    print("KERNEL_OK")
</pallas_src>

<mosaic_0001>
module attributes {stable_mosaic.version = 11 : i64} {
  func.func @lc_attention_kernel(%arg0: i32, %arg1: memref<1x8x32xf32, #tpu.memory_space<vmem>>, %arg2: memref<1x1x32xf32, #tpu.memory_space<vmem>>, %arg3: memref<32x64xf32, #tpu.memory_space<vmem>>, %arg4: memref<32x64xf32, #tpu.memory_space<vmem>>, %arg5: memref<32x64xf32, #tpu.memory_space<vmem>>, %arg6: memref<64x128xf32, #tpu.memory_space<vmem>>, %arg7: memref<1x128xf32, #tpu.memory_space<vmem>>, %arg8: memref<64x4xf32, #tpu.memory_space<vmem>>, %arg9: memref<4x64xf32, #tpu.memory_space<vmem>>, %arg10: memref<1x1x128xf32, #tpu.memory_space<vmem>>) attributes {dimension_semantics = [#tpu.dimension_semantics<parallel>], iteration_bounds = array<i64: 2>, scalar_prefetch = 0 : i64, scratch_operands = 0 : i64, tpu.core_type = #tpu.core_type<tc>, window_params = [{transform_indices = @transform_0, window_bounds = array<i64: 1, 8, 32>}, {transform_indices = @transform_1, window_bounds = array<i64: 1, 1, 32>}, {pipeline_mode = #tpu.pipeline_mode<synchronous>, transform_indices = @transform_2, window_bounds = array<i64: 32, 64>}, {pipeline_mode = #tpu.pipeline_mode<synchronous>, transform_indices = @transform_3, window_bounds = array<i64: 32, 64>}, {pipeline_mode = #tpu.pipeline_mode<synchronous>, transform_indices = @transform_4, window_bounds = array<i64: 32, 64>}, {pipeline_mode = #tpu.pipeline_mode<synchronous>, transform_indices = @transform_5, window_bounds = array<i64: 64, 128>}, {pipeline_mode = #tpu.pipeline_mode<synchronous>, transform_indices = @transform_6, window_bounds = array<i64: 1, 128>}, {pipeline_mode = #tpu.pipeline_mode<synchronous>, transform_indices = @transform_7, window_bounds = array<i64: 64, 4>}, {pipeline_mode = #tpu.pipeline_mode<synchronous>, transform_indices = @transform_8, window_bounds = array<i64: 4, 64>}, {transform_indices = @transform_9, window_bounds = array<i64: 1, 1, 128>}]} {
    %c0 = arith.constant 0 : index
    %c0_0 = arith.constant 0 : index
    %c0_1 = arith.constant 0 : index
    %0 = vector.load %arg1[%c0, %c0_0, %c0_1] : memref<1x8x32xf32, #tpu.memory_space<vmem>>, vector<1x8x32xf32>
    %1 = vector.shape_cast %0 : vector<1x8x32xf32> to vector<8x32xf32>
    %c0_2 = arith.constant 0 : index
    %c0_3 = arith.constant 0 : index
    %c0_4 = arith.constant 0 : index
    %2 = vector.load %arg2[%c0_2, %c0_3, %c0_4] : memref<1x1x32xf32, #tpu.memory_space<vmem>>, vector<1x1x32xf32>
    %3 = vector.shape_cast %2 : vector<1x1x32xf32> to vector<1x32xf32>
    %c0_5 = arith.constant 0 : index
    %c0_6 = arith.constant 0 : index
    %4 = vector.load %arg3[%c0_5, %c0_6] : memref<32x64xf32, #tpu.memory_space<vmem>>, vector<32x64xf32>
    %cst = arith.constant dense<0.000000e+00> : vector<1x64xf32>
    %5 = tpu.matmul %3, %4, %cst {dimension_numbers = #tpu.dot_dimension_numbers<[1], [0], [0], [1], [0, 0, 1, 1], [], []>} : vector<1x32xf32>, vector<32x64xf32>, vector<1x64xf32> -> vector<1x64xf32>
    %c0_7 = arith.constant 0 : index
    %c0_8 = arith.constant 0 : index
    %6 = vector.load %arg4[%c0_7, %c0_8] : memref<32x64xf32, #tpu.memory_space<vmem>>, vector<32x64xf32>
    %cst_9 = arith.constant dense<0.000000e+00> : vector<8x64xf32>
    %7 = tpu.matmul %1, %6, %cst_9 {dimension_numbers = #tpu.dot_dimension_numbers<[1], [0], [0], [1], [0, 0, 1, 1], [], []>} : vector<8x32xf32>, vector<32x64xf32>, vector<8x64xf32> -> vector<8x64xf32>
    %8 = vector.shape_cast %7 : vector<8x64xf32> to vector<1x8x64xf32>
    %9 = vector.shape_cast %5 : vector<1x64xf32> to vector<1x1x64xf32>
    %10 = vector.broadcast %9 : vector<1x1x64xf32> to vector<1x8x64xf32>
    %11 = arith.mulf %8, %10 : vector<1x8x64xf32>
    %12 = vector.shape_cast %11 : vector<1x8x64xf32> to vector<8x64xf32>
    %c0_10 = arith.constant 0 : index
    %c0_11 = arith.constant 0 : index
    %13 = vector.load %arg8[%c0_10, %c0_11] : memref<64x4xf32, #tpu.memory_space<vmem>>, vector<64x4xf32>
    %cst_12 = arith.constant dense<0.000000e+00> : vector<8x4xf32>
    %14 = tpu.matmul %12, %13, %cst_12 {dimension_numbers = #tpu.dot_dimension_numbers<[1], [0], [0], [1], [0, 0, 1, 1], [], []>} : vector<8x64xf32>, vector<64x4xf32>, vector<8x4xf32> -> vector<8x4xf32>
    %15 = vector.shape_cast %14 : vector<8x4xf32> to vector<1x8x4xf32>
    %cst_13 = arith.constant dense<0xFF800000> : vector<1x4xf32>
    %16 = vector.multi_reduction <maximumf>, %15, %cst_13 [1] : vector<1x8x4xf32> to vector<1x4xf32>
    %17 = vector.shape_cast %16 : vector<1x4xf32> to vector<1x1x4xf32>
    %18 = vector.broadcast %17 : vector<1x1x4xf32> to vector<1x8x4xf32>
    %19 = arith.subf %15, %18 : vector<1x8x4xf32>
    %20 = math.exp %19 : vector<1x8x4xf32>
    %cst_14 = arith.constant dense<0.000000e+00> : vector<1x4xf32>
    %21 = vector.multi_reduction <add>, %20, %cst_14 [1] : vector<1x8x4xf32> to vector<1x4xf32>
    %22 = vector.shape_cast %21 : vector<1x4xf32> to vector<1x1x4xf32>
    %23 = vector.broadcast %22 : vector<1x1x4xf32> to vector<1x8x4xf32>
    %24 = arith.divf %20, %23 : vector<1x8x4xf32>
    %25 = vector.shape_cast %24 : vector<1x8x4xf32> to vector<8x4xf32>
    %c0_15 = arith.constant 0 : index
    %c0_16 = arith.constant 0 : index
    %26 = vector.load %arg9[%c0_15, %c0_16] : memref<4x64xf32, #tpu.memory_space<vmem>>, vector<4x64xf32>
    %cst_17 = arith.constant dense<0.000000e+00> : vector<8x64xf32>
    %27 = tpu.matmul %25, %26, %cst_17 {dimension_numbers = #tpu.dot_dimension_numbers<[1], [0], [0], [1], [0, 0, 1, 1], [], []>} : vector<8x4xf32>, vector<4x64xf32>, vector<8x64xf32> -> vector<8x64xf32>
    %28 = vector.shape_cast %27 : vector<8x64xf32> to vector<1x8x64xf32>
    %c0_18 = arith.constant 0 : index
    %c0_19 = arith.constant 0 : index
    %29 = vector.load %arg5[%c0_18, %c0_19] : memref<32x64xf32, #tpu.memory_space<vmem>>, vector<32x64xf32>
    %cst_20 = arith.constant dense<0.000000e+00> : vector<8x64xf32>
    %30 = tpu.matmul %1, %29, %cst_20 {dimension_numbers = #tpu.dot_dimension_numbers<[1], [0], [0], [1], [0, 0, 1, 1], [], []>} : vector<8x32xf32>, vector<32x64xf32>, vector<8x64xf32> -> vector<8x64xf32>
    %31 = vector.shape_cast %30 : vector<8x64xf32> to vector<1x8x64xf32>
    %32 = arith.mulf %28, %31 : vector<1x8x64xf32>
    %cst_21 = arith.constant dense<0.000000e+00> : vector<1x64xf32>
    %33 = vector.multi_reduction <add>, %32, %cst_21 [1] : vector<1x8x64xf32> to vector<1x64xf32>
    %c0_22 = arith.constant 0 : index
    %c0_23 = arith.constant 0 : index
    %34 = vector.load %arg6[%c0_22, %c0_23] : memref<64x128xf32, #tpu.memory_space<vmem>>, vector<64x128xf32>
    %cst_24 = arith.constant dense<0.000000e+00> : vector<1x128xf32>
    %35 = tpu.matmul %33, %34, %cst_24 {dimension_numbers = #tpu.dot_dimension_numbers<[1], [0], [0], [1], [0, 0, 1, 1], [], []>} : vector<1x64xf32>, vector<64x128xf32>, vector<1x128xf32> -> vector<1x128xf32>
    %c0_25 = arith.constant 0 : index
    %c0_26 = arith.constant 0 : index
    %36 = vector.load %arg7[%c0_25, %c0_26] : memref<1x128xf32, #tpu.memory_space<vmem>>, vector<1x128xf32>
    %37 = arith.addf %35, %36 : vector<1x128xf32>
    %c0_27 = arith.constant 0 : index
    %c0_28 = arith.constant 0 : index
    %c0_29 = arith.constant 0 : index
    %38 = vector.load %arg10[%c0_27, %c0_28, %c0_29] : memref<1x1x128xf32, #tpu.memory_space<vmem>>, vector<1x1x128xf32>
    %39 = vector.shape_cast %38 : vector<1x1x128xf32> to vector<1x128xf32>
    %40 = vector.shape_cast %37 : vector<1x128xf32> to vector<1x1x128xf32>
    tpu.vector_store %arg10[%c0_27, %c0_28, %c0_29], %40 {strides = array<i32>} : memref<1x1x128xf32, #tpu.memory_space<vmem>>, vector<1x1x128xf32>,
    return
  }
  func.func @transform_0(%arg0: i32) -> (i32, i32, i32) {
    %c0_i32 = arith.constant 0 : i32
    %c0_i32_0 = arith.constant 0 : i32
    %c0_i32_1 = arith.constant 0 : i32
    return %arg0, %c0_i32, %c0_i32_0 : i32, i32, i32
  }
  func.func @transform_1(%arg0: i32) -> (i32, i32, i32) {
    %c0_i32 = arith.constant 0 : i32
    %c0_i32_0 = arith.constant 0 : i32
    %c0_i32_1 = arith.constant 0 : i32
    return %arg0, %c0_i32, %c0_i32_0 : i32, i32, i32
  }
  func.func @transform_2(%arg0: i32) -> (i32, i32) {
    %c0_i32 = arith.constant 0 : i32
    %c0_i32_0 = arith.constant 0 : i32
    %c0_i32_1 = arith.constant 0 : i32
    return %c0_i32, %c0_i32_0 : i32, i32
  }
  func.func @transform_3(%arg0: i32) -> (i32, i32) {
    %c0_i32 = arith.constant 0 : i32
    %c0_i32_0 = arith.constant 0 : i32
    %c0_i32_1 = arith.constant 0 : i32
    return %c0_i32, %c0_i32_0 : i32, i32
  }
  func.func @transform_4(%arg0: i32) -> (i32, i32) {
    %c0_i32 = arith.constant 0 : i32
    %c0_i32_0 = arith.constant 0 : i32
    %c0_i32_1 = arith.constant 0 : i32
    return %c0_i32, %c0_i32_0 : i32, i32
  }
  func.func @transform_5(%arg0: i32) -> (i32, i32) {
    %c0_i32 = arith.constant 0 : i32
    %c0_i32_0 = arith.constant 0 : i32
    %c0_i32_1 = arith.constant 0 : i32
    return %c0_i32, %c0_i32_0 : i32, i32
  }
  func.func @transform_6(%arg0: i32) -> (i32, i32) {
    %c0_i32 = arith.constant 0 : i32
    %c0_i32_0 = arith.constant 0 : i32
    %c0_i32_1 = arith.constant 0 : i32
    return %c0_i32, %c0_i32_0 : i32, i32
  }
  func.func @transform_7(%arg0: i32) -> (i32, i32) {
    %c0_i32 = arith.constant 0 : i32
    %c0_i32_0 = arith.constant 0 : i32
    %c0_i32_1 = arith.constant 0 : i32
    return %c0_i32, %c0_i32_0 : i32, i32
  }
  func.func @transform_8(%arg0: i32) -> (i32, i32) {
    %c0_i32 = arith.constant 0 : i32
    %c0_i32_0 = arith.constant 0 : i32
    %c0_i32_1 = arith.constant 0 : i32
    return %c0_i32, %c0_i32_0 : i32, i32
  }
  func.func @transform_9(%arg0: i32) -> (i32, i32, i32) {
    %c0_i32 = arith.constant 0 : i32
    %c0_i32_0 = arith.constant 0 : i32
    %c0_i32_1 = arith.constant 0 : i32
    return %arg0, %c0_i32, %c0_i32_0 : i32, i32, i32
  }
}

module attributes {stable_mosaic.version = 11 : i64} {
  func.func @lc_attention_kernel(%arg0: i32, %arg1: memref<1x8x32xf32, #tpu.memory_space<vmem>>, %arg2: memref<1x1x32xf32, #tpu.memory_space<vmem>>, %arg3: memref<32x64xf32, #tpu.memory_space<vmem>>, %arg4: memref<32x64xf32, #tpu.memory_space<vmem>>, %arg5: memref<32x64xf32, #tpu.memory_space<vmem>>, %arg6: memref<64x128xf32, #tpu.memory_space<vmem>>, %arg7: memref<1x128xf32, #tpu.memory_space<vmem>>, %arg8: memref<64x4xf32, #tpu.memory_space<vmem>>, %arg9: memref<4x64xf32, #tpu.memory_space<vmem>>, %arg10: memref<1x1x128xf32, #tpu.memory_space<vmem>>) attributes {dimension_semantics = [#tpu.dimension_semantics<parallel>], iteration_bounds = array<i64: 2>, scalar_prefetch = 0 : i64, scratch_operands = 0 : i64, tpu.core_type = #tpu.core_type<tc>, window_params = [{transform_indices = @transform_0, window_bounds = array<i64: 1, 8, 32>}, {transform_indices = @transform_1, window_bounds = array<i64: 1, 1, 32>}, {pipeline_mode = #tpu.pipeline_mode<synchronous>, transform_indices = @transform_2, window_bounds = array<i64: 32, 64>}, {pipeline_mode = #tpu.pipeline_mode<synchronous>, transform_indices = @transform_3, window_bounds = array<i64: 32, 64>}, {pipeline_mode = #tpu.pipeline_mode<synchronous>, transform_indices = @transform_4, window_bounds = array<i64: 32, 64>}, {pipeline_mode = #tpu.pipeline_mode<synchronous>, transform_indices = @transform_5, window_bounds = array<i64: 64, 128>}, {pipeline_mode = #tpu.pipeline_mode<synchronous>, transform_indices = @transform_6, window_bounds = array<i64: 1, 128>}, {pipeline_mode = #tpu.pipeline_mode<synchronous>, transform_indices = @transform_7, window_bounds = array<i64: 64, 4>}, {pipeline_mode = #tpu.pipeline_mode<synchronous>, transform_indices = @transform_8, window_bounds = array<i64: 4, 64>}, {transform_indices = @transform_9, window_bounds = array<i64: 1, 1, 128>}]} {
    %c0 = arith.constant 0 : index
    %c0_0 = arith.constant 0 : index
    %c0_1 = arith.constant 0 : index
    %0 = vector.load %arg1[%c0, %c0_0, %c0_1] : memref<1x8x32xf32, #tpu.memory_space<vmem>>, vector<1x8x32xf32>
    %1 = vector.shape_cast %0 : vector<1x8x32xf32> to vector<8x32xf32>
    %c0_2 = arith.constant 0 : index
    %c0_3 = arith.constant 0 : index
    %c0_4 = arith.constant 0 : index
    %2 = vector.load %arg2[%c0_2, %c0_3, %c0_4] : memref<1x1x32xf32, #tpu.memory_space<vmem>>, vector<1x1x32xf32>
    %3 = vector.shape_cast %2 : vector<1x1x32xf32> to vector<1x32xf32>
    %c0_5 = arith.constant 0 : index
    %c0_6 = arith.constant 0 : index
    %4 = vector.load %arg3[%c0_5, %c0_6] : memref<32x64xf32, #tpu.memory_space<vmem>>, vector<32x64xf32>
    %cst = arith.constant dense<0.000000e+00> : vector<1x64xf32>
    %5 = tpu.matmul %3, %4, %cst {dimension_numbers = #tpu.dot_dimension_numbers<[1], [0], [0], [1], [0, 0, 1, 1], [], []>} : vector<1x32xf32>, vector<32x64xf32>, vector<1x64xf32> -> vector<1x64xf32>
    %c0_7 = arith.constant 0 : index
    %c0_8 = arith.constant 0 : index
    %6 = vector.load %arg4[%c0_7, %c0_8] : memref<32x64xf32, #tpu.memory_space<vmem>>, vector<32x64xf32>
    %cst_9 = arith.constant dense<0.000000e+00> : vector<8x64xf32>
    %7 = tpu.matmul %1, %6, %cst_9 {dimension_numbers = #tpu.dot_dimension_numbers<[1], [0], [0], [1], [0, 0, 1, 1], [], []>} : vector<8x32xf32>, vector<32x64xf32>, vector<8x64xf32> -> vector<8x64xf32>
    %8 = vector.shape_cast %7 : vector<8x64xf32> to vector<1x8x64xf32>
    %9 = vector.shape_cast %5 : vector<1x64xf32> to vector<1x1x64xf32>
    %10 = vector.broadcast %9 : vector<1x1x64xf32> to vector<1x8x64xf32>
    %11 = arith.mulf %8, %10 : vector<1x8x64xf32>
    %12 = vector.shape_cast %11 : vector<1x8x64xf32> to vector<8x64xf32>
    %c0_10 = arith.constant 0 : index
    %c0_11 = arith.constant 0 : index
    %13 = vector.load %arg8[%c0_10, %c0_11] : memref<64x4xf32, #tpu.memory_space<vmem>>, vector<64x4xf32>
    %cst_12 = arith.constant dense<0.000000e+00> : vector<8x4xf32>
    %14 = tpu.matmul %12, %13, %cst_12 {dimension_numbers = #tpu.dot_dimension_numbers<[1], [0], [0], [1], [0, 0, 1, 1], [], []>} : vector<8x64xf32>, vector<64x4xf32>, vector<8x4xf32> -> vector<8x4xf32>
    %15 = vector.shape_cast %14 : vector<8x4xf32> to vector<1x8x4xf32>
    %cst_13 = arith.constant dense<0xFF800000> : vector<1x4xf32>
    %16 = vector.multi_reduction <maximumf>, %15, %cst_13 [1] : vector<1x8x4xf32> to vector<1x4xf32>
    %17 = vector.shape_cast %16 : vector<1x4xf32> to vector<1x1x4xf32>
    %18 = vector.broadcast %17 : vector<1x1x4xf32> to vector<1x8x4xf32>
    %19 = arith.subf %15, %18 : vector<1x8x4xf32>
    %20 = math.exp %19 : vector<1x8x4xf32>
    %cst_14 = arith.constant dense<0.000000e+00> : vector<1x4xf32>
    %21 = vector.multi_reduction <add>, %20, %cst_14 [1] : vector<1x8x4xf32> to vector<1x4xf32>
    %22 = vector.shape_cast %21 : vector<1x4xf32> to vector<1x1x4xf32>
    %23 = vector.broadcast %22 : vector<1x1x4xf32> to vector<1x8x4xf32>
    %24 = arith.divf %20, %23 : vector<1x8x4xf32>
    %25 = vector.shape_cast %24 : vector<1x8x4xf32> to vector<8x4xf32>
    %c0_15 = arith.constant 0 : index
    %c0_16 = arith.constant 0 : index
    %26 = vector.load %arg9[%c0_15, %c0_16] : memref<4x64xf32, #tpu.memory_space<vmem>>, vector<4x64xf32>
    %cst_17 = arith.constant dense<0.000000e+00> : vector<8x64xf32>
    %27 = tpu.matmul %25, %26, %cst_17 {dimension_numbers = #tpu.dot_dimension_numbers<[1], [0], [0], [1], [0, 0, 1, 1], [], []>} : vector<8x4xf32>, vector<4x64xf32>, vector<8x64xf32> -> vector<8x64xf32>
    %28 = vector.shape_cast %27 : vector<8x64xf32> to vector<1x8x64xf32>
    %c0_18 = arith.constant 0 : index
    %c0_19 = arith.constant 0 : index
    %29 = vector.load %arg5[%c0_18, %c0_19] : memref<32x64xf32, #tpu.memory_space<vmem>>, vector<32x64xf32>
    %cst_20 = arith.constant dense<0.000000e+00> : vector<8x64xf32>
    %30 = tpu.matmul %1, %29, %cst_20 {dimension_numbers = #tpu.dot_dimension_numbers<[1], [0], [0], [1], [0, 0, 1, 1], [], []>} : vector<8x32xf32>, vector<32x64xf32>, vector<8x64xf32> -> vector<8x64xf32>
    %31 = vector.shape_cast %30 : vector<8x64xf32> to vector<1x8x64xf32>
    %32 = arith.mulf %28, %31 : vector<1x8x64xf32>
    %cst_21 = arith.constant dense<0.000000e+00> : vector<1x64xf32>
    %33 = vector.multi_reduction <add>, %32, %cst_21 [1] : vector<1x8x64xf32> to vector<1x64xf32>
    %c0_22 = arith.constant 0 : index
    %c0_23 = arith.constant 0 : index
    %34 = vector.load %arg6[%c0_22, %c0_23] : memref<64x128xf32, #tpu.memory_space<vmem>>, vector<64x128xf32>
    %cst_24 = arith.constant dense<0.000000e+00> : vector<1x128xf32>
    %35 = tpu.matmul %33, %34, %cst_24 {dimension_numbers = #tpu.dot_dimension_numbers<[1], [0], [0], [1], [0, 0, 1, 1], [], []>} : vector<1x64xf32>, vector<64x128xf32>, vector<1x128xf32> -> vector<1x128xf32>
    %c0_25 = arith.constant 0 : index
    %c0_26 = arith.constant 0 : index
    %36 = vector.load %arg7[%c0_25, %c0_26] : memref<1x128xf32, #tpu.memory_space<vmem>>, vector<1x128xf32>
    %37 = arith.addf %35, %36 : vector<1x128xf32>
    %c0_27 = arith.constant 0 : index
    %c0_28 = arith.constant 0 : index
    %c0_29 = arith.constant 0 : index
    %38 = vector.load %arg10[%c0_27, %c0_28, %c0_29] : memref<1x1x128xf32, #tpu.memory_space<vmem>>, vector<1x1x128xf32>
    %39 = vector.shape_cast %38 : vector<1x1x128xf32> to vector<1x128xf32>
    %40 = vector.shape_cast %37 : vector<1x128xf32> to vector<1x1x128xf32>
    tpu.vector_store %arg10[%c0_27, %c0_28, %c0_29], %40 {strides = array<i32>} : memref<1x1x128xf32, #tpu.memory_space<vmem>>, vector<1x1x128xf32>,
    return
  }
  func.func @transform_0(%arg0: i32) -> (i32, i32, i32) {
    %c0_i32 = arith.constant 0 : i32
    %c0_i32_0 = arith.constant 0 : i32
    %c0_i32_1 = arith.constant 0 : i32
    return %arg0, %c0_i32, %c0_i32_0 : i32, i32, i32
  }
  func.func @transform_1(%arg0: i32) -> (i32, i32, i32) {
    %c0_i32 = arith.constant 0 : i32
    %c0_i32_0 = arith.constant 0 : i32
    %c0_i32_1 = arith.constant 0 : i32
    return %arg0, %c0_i32, %c0_i32_0 : i32, i32, i32
  }
  func.func @transform_2(%arg0: i32) -> (i32, i32) {
    %c0_i32 = arith.constant 0 : i32
    %c0_i32_0 = arith.constant 0 : i32
    %c0_i32_1 = arith.constant 0 : i32
    return %c0_i32, %c0_i32_0 : i32, i32
  }
  func.func @transform_3(%arg0: i32) -> (i32, i32) {
    %c0_i32 = arith.constant 0 : i32
    %c0_i32_0 = arith.constant 0 : i32
    %c0_i32_1 = arith.constant 0 : i32
    return %c0_i32, %c0_i32_0 : i32, i32
  }
  func.func @transform_4(%arg0: i32) -> (i32, i32) {
    %c0_i32 = arith.constant 0 : i32
    %c0_i32_0 = arith.constant 0 : i32
    %c0_i32_1 = arith.constant 0 : i32
    return %c0_i32, %c0_i32_0 : i32, i32
  }
  func.func @transform_5(%arg0: i32) -> (i32, i32) {
    %c0_i32 = arith.constant 0 : i32
    %c0_i32_0 = arith.constant 0 : i32
    %c0_i32_1 = arith.constant 0 : i32
    return %c0_i32, %c0_i32_0 : i32, i32
  }
  func.func @transform_6(%arg0: i32) -> (i32, i32) {
    %c0_i32 = arith.constant 0 : i32
    %c0_i32_0 = arith.constant 0 : i32
    %c0_i32_1 = arith.constant 0 : i32
    return %c0_i32, %c0_i32_0 : i32, i32
  }
  func.func @transform_7(%arg0: i32) -> (i32, i32) {
    %c0_i32 = arith.constant 0 : i32
    %c0_i32_0 = arith.constant 0 : i32
    %c0_i32_1 = arith.constant 0 : i32
    return %c0_i32, %c0_i32_0 : i32, i32
  }
  func.func @transform_8(%arg0: i32) -> (i32, i32) {
    %c0_i32 = arith.constant 0 : i32
    %c0_i32_0 = arith.constant 0 : i32
    %c0_i32_1 = arith.constant 0 : i32
    return %c0_i32, %c0_i32_0 : i32, i32
  }
  func.func @transform_9(%arg0: i32) -> (i32, i32, i32) {
    %c0_i32 = arith.constant 0 : i32
    %c0_i32_0 = arith.constant 0 : i32
    %c0_i32_1 = arith.constant 0 : i32
    return %arg0, %c0_i32, %c0_i32_0 : i32, i32, i32
  }
}

</mosaic_0001>

<llo_original>
// kernel: tpu_custom_call.1
$region0: #{tpu_custom_call.1}
  #allocation0 [shape = 'u32[]', space=smem, size = 0x4, offset = 0x4, fixed_abs, tag = 'smem constant byte address 0x4 - core index']
  #allocation1 [shape = 'u32[144,128]{1,0:T(1,128)}', space=vmem, size = 0x12000, scoped, tag = 'internal scratch']
  %s0 = inlined_call_operand.hbm [shape: f32[2,8,32], index: 0, kind: input, shape index: {}]
  %s1 = inlined_call_operand.vmem [shape: f32[2,1,32], index: 1, kind: input, shape index: {}]
  %s2 = inlined_call_operand.hbm [shape: f32[32,64], index: 2, kind: input, shape index: {}]
  %s3 = inlined_call_operand.hbm [shape: f32[32,64], index: 3, kind: input, shape index: {}]
  %s4 = inlined_call_operand.hbm [shape: f32[32,64], index: 4, kind: input, shape index: {}]
  %s5 = inlined_call_operand.vmem [shape: f32[64,128], index: 5, kind: input, shape index: {}]
  %s6 = inlined_call_operand.vmem [shape: f32[1,128], index: 6, kind: input, shape index: {}]
  %s7 = inlined_call_operand.vmem [shape: f32[64,4], index: 7, kind: input, shape index: {}]
  %s8 = inlined_call_operand.vmem [shape: f32[4,64], index: 8, kind: input, shape index: {}]
  %s9 = inlined_call_operand.hbm [shape: f32[2,1,128], index: 9, kind: output, shape index: {}]
  %s10 = sld [smem:[#allocation0]]
  $region85: #{tpu_custom_call.1} parent=0
    _
  %s12 = ssub.s32 1, %s10
  %s13 = scalar_select 0, %s12, %s10
  $region1: #{tpu_custom_call.1} parent=0
    #allocation2 [shape = 'u8[8192]{0}', space=vmem, size = 0x2000, scoped, tag = 'input window, operand 0']
    #allocation3 [shape = 's32[2]{0}', space=sflag, size = 0x8, scoped, tag = 'scoped memory for tpu_custom_call.1']
    #allocation4 [shape = 's32[2]{0}', space=sflag, size = 0x8, scoped, tag = 'scoped memory for tpu_custom_call.1']
    #allocation5 [shape = 'u8[16384]{0}', space=vmem, size = 0x4000, scoped, tag = 'input window, operand 2, single buffered']
    #allocation6 [shape = 's32[1]{0}', space=sflag, size = 0x4, scoped, tag = 'scoped memory for tpu_custom_call.1']
    #allocation7 [shape = 'u8[16384]{0}', space=vmem, size = 0x4000, scoped, tag = 'input window, operand 3, single buffered']
    #allocation8 [shape = 'u8[16384]{0}', space=vmem, size = 0x4000, scoped, tag = 'input window, operand 4, single buffered']
    #allocation9 [shape = 's32[1]{0}', space=sflag, size = 0x4, scoped, tag = 'scoped memory for tpu_custom_call.1']
    #allocation10 [shape = 'u8[1024]{0}', space=vmem, size = 0x400, scoped, tag = 'output window, operand 0']
    %14 = vsyncpa [#allocation3], 0
    %s15 = scalar_lea.sflag [#allocation3], 1
    %16 = vsyncpa %s15, 0
    %17 = vsyncpa [#allocation6], 0
    %18 = vsyncpa [#allocation9], 0
    %19 = vsyncpa [#allocation4], 0
    %s20 = scalar_lea.sflag [#allocation4], 1
    %21 = vsyncpa %s20, 0
    loop: start=0, step=1, limit=4
    $region2: #{tpu_custom_call.1} parent=1 // loop_pre_header
      _
    $region3: #{tpu_custom_call.1} parent=1 // loop_header
      %s23 = sphi 0, %s27
      %p24 = scmp.ge.s32.totalorder %s23, 4
      %s33 = sphi 0, %s35
      %s36 = sphi 0, %s33
      %s37 = sphi 0, %s36
      %s53 = sphi 0, %s37
      %s59 = sphi 0, %s61
      %s62 = sphi 0, %s59
      %s63 = sphi 0, %s62
      %s79 = sphi 0, %s63
      %s83 = sphi 0, %s83
      %s85 = sphi 0, %s83
      %s86 = sphi 0, %s85
      %s100 = sphi 0, %s86
      %s104 = sphi 0, %s104
      %s106 = sphi 0, %s104
      %s107 = sphi 0, %s106
      %s121 = sphi 0, %s107
      %s125 = sphi 0, %s125
      %s127 = sphi 0, %s125
      %s128 = sphi 0, %s127
      %s142 = sphi 0, %s128
      %s146 = sphi 0, %s146
      %s148 = sphi 0, %s146
      %s149 = sphi 0, %s148
      %s163 = sphi 0, %s149
      %s167 = sphi 0, %s167
      %s169 = sphi 0, %s167
      %s170 = sphi 0, %s169
      %s184 = sphi 0, %s170
      %s188 = sphi 0, %s188
      %s190 = sphi 0, %s188
      %s191 = sphi 0, %s190
      %s205 = sphi 0, %s191
      %s209 = sphi 0, %s209
      %s211 = sphi 0, %s209
      %s212 = sphi 0, %s211
      %s226 = sphi 0, %s212
      %s232 = sphi 0, %s234
      %s235 = sphi 0, %s232
      %s236 = sphi 0, %s235
      %s252 = sphi 0, %s236
    $region4: #{tpu_custom_call.1} parent=1 // loop_header_branch
      %26 = sbr.rel (%p24) target = $region8
    $region5: #{tpu_custom_call.1} parent=1 // loop_body
      %s28 = ssub.s32 %s23, 1
      %s29 = ssub.s32 %s23, 2
      %s30 = sadd.s32 %s23, 1
      %s31 = ssub.s32 %s23, %s30
      %p32 = scmp.eq.s32.totalorder %s31, 0
      %s34 = sadd.s32 %s33, 1
      %s35 = scalar_select %p32, %s33, %s34
      %p38 = pneg %p32
      %p39 = scmp.eq.s32.totalorder %s23, 1
      %p40 = por %p38, %p39
      %p41 = scmp.ne.s32.totalorder %s33, %s36
      %p42 = scmp.eq.s32.totalorder %s23, 0
      %p43 = por %p41, %p42
      %p44 = scmp.ne.s32.totalorder %s33, %s36
      %p45 = scmp.eq.s32.totalorder %s28, 1
      %p46 = por %p44, %p45
      %p47 = scmp.ne.s32.totalorder %s36, %s37
      %p48 = scmp.eq.s32.totalorder %s28, 0
      %p49 = por %p47, %p48
      %p50 = scmp.ne.s32.totalorder %s36, %s37
      %p51 = scmp.eq.s32.totalorder %s29, 1
      %p52 = por %p50, %p51
      %p54 = scmp.ne.s32.totalorder %s37, %s53
      %p55 = scmp.eq.s32.totalorder %s29, 0
      %p56 = por %p54, %p55
      %s57 = ssub.s32 %s23, %s30
      %p58 = scmp.eq.s32.totalorder %s57, 0
      %s60 = sadd.s32 %s59, 1
      %s61 = scalar_select %p58, %s59, %s60
      %p64 = pneg %p58
      %p65 = scmp.eq.s32.totalorder %s23, 1
      %p66 = por %p64, %p65
      %p67 = scmp.ne.s32.totalorder %s59, %s62
      %p68 = scmp.eq.s32.totalorder %s23, 0
      %p69 = por %p67, %p68
      %p70 = scmp.ne.s32.totalorder %s59, %s62
      %p71 = scmp.eq.s32.totalorder %s28, 1
      %p72 = por %p70, %p71
      %p73 = scmp.ne.s32.totalorder %s62, %s63
      %p74 = scmp.eq.s32.totalorder %s28, 0
      %p75 = por %p73, %p74
      %p76 = scmp.ne.s32.totalorder %s62, %s63
      %p77 = scmp.eq.s32.totalorder %s29, 1
      %p78 = por %p76, %p77
      %p80 = scmp.ne.s32.totalorder %s63, %s79
      %p81 = scmp.eq.s32.totalorder %s29, 0
      %p82 = por %p80, %p81
      %s84 = sadd.s32 %s83, 1
      %p87 = scmp.eq.s32.totalorder %s23, 1
      %p88 = scmp.ne.s32.totalorder %s83, %s85
      %p89 = scmp.eq.s32.totalorder %s23, 0
      %p90 = por %p88, %p89
      %p91 = scmp.ne.s32.totalorder %s83, %s85
      %p92 = scmp.eq.s32.totalorder %s28, 1
      %p93 = por %p91, %p92
      %p94 = scmp.ne.s32.totalorder %s85, %s86
      %p95 = scmp.eq.s32.totalorder %s28, 0
      %p96 = por %p94, %p95
      %p97 = scmp.ne.s32.totalorder %s85, %s86
      %p98 = scmp.eq.s32.totalorder %s29, 1
      %p99 = por %p97, %p98
      %p101 = scmp.ne.s32.totalorder %s86, %s100
      %p102 = scmp.eq.s32.totalorder %s29, 0
      %p103 = por %p101, %p102
      %s105 = sadd.s32 %s104, 1
      %p108 = scmp.eq.s32.totalorder %s23, 1
      %p109 = scmp.ne.s32.totalorder %s104, %s106
      %p110 = scmp.eq.s32.totalorder %s23, 0
      %p111 = por %p109, %p110
      %p112 = scmp.ne.s32.totalorder %s104, %s106
      %p113 = scmp.eq.s32.totalorder %s28, 1
      %p114 = por %p112, %p113
      %p115 = scmp.ne.s32.totalorder %s106, %s107
      %p116 = scmp.eq.s32.totalorder %s28, 0
      %p117 = por %p115, %p116
      %p118 = scmp.ne.s32.totalorder %s106, %s107
      %p119 = scmp.eq.s32.totalorder %s29, 1
      %p120 = por %p118, %p119
      %p122 = scmp.ne.s32.totalorder %s107, %s121
      %p123 = scmp.eq.s32.totalorder %s29, 0
      %p124 = por %p122, %p123
      %s126 = sadd.s32 %s125, 1
      %p129 = scmp.eq.s32.totalorder %s23, 1
      %p130 = scmp.ne.s32.totalorder %s125, %s127
      %p131 = scmp.eq.s32.totalorder %s23, 0
      %p132 = por %p130, %p131
      %p133 = scmp.ne.s32.totalorder %s125, %s127
      %p134 = scmp.eq.s32.totalorder %s28, 1
      %p135 = por %p133, %p134
      %p136 = scmp.ne.s32.totalorder %s127, %s128
      %p137 = scmp.eq.s32.totalorder %s28, 0
      %p138 = por %p136, %p137
      %p139 = scmp.ne.s32.totalorder %s127, %s128
      %p140 = scmp.eq.s32.totalorder %s29, 1
      %p141 = por %p139, %p140
      %p143 = scmp.ne.s32.totalorder %s128, %s142
      %p144 = scmp.eq.s32.totalorder %s29, 0
      %p145 = por %p143, %p144
      %s147 = sadd.s32 %s146, 1
      %p150 = scmp.eq.s32.totalorder %s23, 1
      %p151 = scmp.ne.s32.totalorder %s146, %s148
      %p152 = scmp.eq.s32.totalorder %s23, 0
      %p153 = por %p151, %p152
      %p154 = scmp.ne.s32.totalorder %s146, %s148
      %p155 = scmp.eq.s32.totalorder %s28, 1
      %p156 = por %p154, %p155
      %p157 = scmp.ne.s32.totalorder %s148, %s149
      %p158 = scmp.eq.s32.totalorder %s28, 0
      %p159 = por %p157, %p158
      %p160 = scmp.ne.s32.totalorder %s148, %s149
      %p161 = scmp.eq.s32.totalorder %s29, 1
      %p162 = por %p160, %p161
      %p164 = scmp.ne.s32.totalorder %s149, %s163
      %p165 = scmp.eq.s32.totalorder %s29, 0
      %p166 = por %p164, %p165
      %s168 = sadd.s32 %s167, 1
      %p171 = scmp.eq.s32.totalorder %s23, 1
      %p172 = scmp.ne.s32.totalorder %s167, %s169
      %p173 = scmp.eq.s32.totalorder %s23, 0
      %p174 = por %p172, %p173
      %p175 = scmp.ne.s32.totalorder %s167, %s169
      %p176 = scmp.eq.s32.totalorder %s28, 1
      %p177 = por %p175, %p176
      %p178 = scmp.ne.s32.totalorder %s169, %s170
      %p179 = scmp.eq.s32.totalorder %s28, 0
      %p180 = por %p178, %p179
      %p181 = scmp.ne.s32.totalorder %s169, %s170
      %p182 = scmp.eq.s32.totalorder %s29, 1
      %p183 = por %p181, %p182
      %p185 = scmp.ne.s32.totalorder %s170, %s184
      %p186 = scmp.eq.s32.totalorder %s29, 0
      %p187 = por %p185, %p186
      %s189 = sadd.s32 %s188, 1
      %p192 = scmp.eq.s32.totalorder %s23, 1
      %p193 = scmp.ne.s32.totalorder %s188, %s190
      %p194 = scmp.eq.s32.totalorder %s23, 0
      %p195 = por %p193, %p194
      %p196 = scmp.ne.s32.totalorder %s188, %s190
      %p197 = scmp.eq.s32.totalorder %s28, 1
      %p198 = por %p196, %p197
      %p199 = scmp.ne.s32.totalorder %s190, %s191
      %p200 = scmp.eq.s32.totalorder %s28, 0
      %p201 = por %p199, %p200
      %p202 = scmp.ne.s32.totalorder %s190, %s191
      %p203 = scmp.eq.s32.totalorder %s29, 1
      %p204 = por %p202, %p203
      %p206 = scmp.ne.s32.totalorder %s191, %s205
      %p207 = scmp.eq.s32.totalorder %s29, 0
      %p208 = por %p206, %p207
      %s210 = sadd.s32 %s209, 1
      %p213 = scmp.eq.s32.totalorder %s23, 1
      %p214 = scmp.ne.s32.totalorder %s209, %s211
      %p215 = scmp.eq.s32.totalorder %s23, 0
      %p216 = por %p214, %p215
      %p217 = scmp.ne.s32.totalorder %s209, %s211
      %p218 = scmp.eq.s32.totalorder %s28, 1
      %p219 = por %p217, %p218
      %p220 = scmp.ne.s32.totalorder %s211, %s212
      %p221 = scmp.eq.s32.totalorder %s28, 0
      %p222 = por %p220, %p221
      %p223 = scmp.ne.s32.totalorder %s211, %s212
      %p224 = scmp.eq.s32.totalorder %s29, 1
      %p225 = por %p223, %p224
      %p227 = scmp.ne.s32.totalorder %s212, %s226
      %p228 = scmp.eq.s32.totalorder %s29, 0
      %p229 = por %p227, %p228
      %s230 = ssub.s32 %s23, %s30
      %p231 = scmp.eq.s32.totalorder %s230, 0
      %s233 = sadd.s32 %s232, 1
      %s234 = scalar_select %p231, %s232, %s233
      %p237 = pneg %p231
      %p238 = scmp.eq.s32.totalorder %s23, 1
      %p239 = por %p237, %p238
      %p240 = scmp.ne.s32.totalorder %s232, %s235
      %p241 = scmp.eq.s32.totalorder %s23, 0
      %p242 = por %p240, %p241
      %p243 = scmp.ne.s32.totalorder %s232, %s235
      %p244 = scmp.eq.s32.totalorder %s28, 1
      %p245 = por %p243, %p244
      %p246 = scmp.ne.s32.totalorder %s235, %s236
      %p247 = scmp.eq.s32.totalorder %s28, 0
      %p248 = por %p246, %p247
      %p249 = scmp.ne.s32.totalorder %s235, %s236
      %p250 = scmp.eq.s32.totalorder %s29, 1
      %p251 = por %p249, %p250
      %p253 = scmp.ne.s32.totalorder %s236, %s252
      %p254 = scmp.eq.s32.totalorder %s29, 0
      %p255 = por %p253, %p254
      %p256 = scmp.le.s32.totalorder 1, %s23
      %p257 = scmp.lt.s32.totalorder %s23, 3
      %p258 = pnand %p256, %p257
      %p259 = pneg %p258
      // Predicated region
      $region9: #{tpu_custom_call.1} parent=5 // pred_check
        _
      $region10: #{tpu_custom_call.1} parent=5 // pred_check_branch
        %261 = sbr.rel (%p258) target = $region12
      $region11: #{tpu_custom_call.1} parent=5 // pred_region
        %s262 = ssub.s32 %s23, 1
        // Predicated region
        $region13: #{tpu_custom_call.1} parent=11 // pred_check
          %p263 = pneg %p96
        $region14: #{tpu_custom_call.1} parent=11 // pred_check_branch
          %265 = sbr.rel (%p263) target = $region16
        $region15: #{tpu_custom_call.1} parent=11 // pred_region
          %s267 = ssub.s32 512, 512
          %268 = vsyncadd [#allocation6], %s267
          %s269 = sshll.u32 [#allocation5], 4
          %s270 = int_to_ptr.vmem [resolvable:$true] %s269
          %275 = dma.hbm_to_vmem [thread:$0]  %s2, 512, %s270, [#allocation6], 128, 128, 8
        $region16: #{tpu_custom_call.1} parent=11 // pred_fallthru
          _
        // Predicated region
        $region17: #{tpu_custom_call.1} parent=11 // pred_check
          %p276 = pneg %p117
        $region18: #{tpu_custom_call.1} parent=11 // pred_check_branch
          %278 = sbr.rel (%p276) target = $region20
        $region19: #{tpu_custom_call.1} parent=11 // pred_region
          %s280 = ssub.s32 512, 512
          %281 = vsyncadd [#allocation6], %s280
          %s282 = sshll.u32 [#allocation7], 4
          %s283 = int_to_ptr.vmem [resolvable:$true] %s282
          %288 = dma.hbm_to_vmem [thread:$0]  %s3, 512, %s283, [#allocation6], 128, 128, 8
        $region20: #{tpu_custom_call.1} parent=11 // pred_fallthru
          _
        // Predicated region
        $region21: #{tpu_custom_call.1} parent=11 // pred_check
          %p289 = pneg %p138
        $region22: #{tpu_custom_call.1} parent=11 // pred_check_branch
          %291 = sbr.rel (%p289) target = $region24
        $region23: #{tpu_custom_call.1} parent=11 // pred_region
          %s293 = ssub.s32 512, 512
          %294 = vsyncadd [#allocation9], %s293
          %s295 = sshll.u32 [#allocation8], 4
          %s296 = int_to_ptr.vmem [resolvable:$true] %s295
          %301 = dma.hbm_to_vmem [thread:$0]  %s4, 512, %s296, [#allocation9], 128, 128, 8
        $region24: #{tpu_custom_call.1} parent=11 // pred_fallthru
          _
        // Predicated region
        $region25: #{tpu_custom_call.1} parent=11 // pred_check
          %p302 = pneg %p159
        $region26: #{tpu_custom_call.1} parent=11 // pred_check_branch
          %304 = sbr.rel (%p302) target = $region28
        $region27: #{tpu_custom_call.1} parent=11 // pred_region
          _
        $region28: #{tpu_custom_call.1} parent=11 // pred_fallthru
          _
        // Predicated region
        $region29: #{tpu_custom_call.1} parent=11 // pred_check
          %p305 = pneg %p180
        $region30: #{tpu_custom_call.1} parent=11 // pred_check_branch
          %307 = sbr.rel (%p305) target = $region32
        $region31: #{tpu_custom_call.1} parent=11 // pred_region
          _
        $region32: #{tpu_custom_call.1} parent=11 // pred_fallthru
          _
        // Predicated region
        $region33: #{tpu_custom_call.1} parent=11 // pred_check
          %p308 = pneg %p201
        $region34: #{tpu_custom_call.1} parent=11 // pred_check_branch
          %310 = sbr.rel (%p308) target = $region36
        $region35: #{tpu_custom_call.1} parent=11 // pred_region
          _
        $region36: #{tpu_custom_call.1} parent=11 // pred_fallthru
          _
        // Predicated region
        $region37: #{tpu_custom_call.1} parent=11 // pred_check
          %p311 = pneg %p222
        $region38: #{tpu_custom_call.1} parent=11 // pred_check_branch
          %313 = sbr.rel (%p311) target = $region40
        $region39: #{tpu_custom_call.1} parent=11 // pred_region
          _
        $region40: #{tpu_custom_call.1} parent=11 // pred_fallthru
          _
      $region12: #{tpu_custom_call.1} parent=5 // pred_fallthru
        _
      %p314 = scmp.lt.s32.totalorder %s23, 2
      // Predicated region
      $region41: #{tpu_custom_call.1} parent=5 // pred_check
        %p315 = pneg %p314
      $region42: #{tpu_custom_call.1} parent=5 // pred_check_branch
        %317 = sbr.rel (%p315) target = $region44
      $region43: #{tpu_custom_call.1} parent=5 // pred_region
        // Predicated region
        $region45: #{tpu_custom_call.1} parent=43 // pred_check
          %p318 = pneg %p43
        $region46: #{tpu_custom_call.1} parent=43 // pred_check_branch
          %320 = sbr.rel (%p318) target = $region48
        $region47: #{tpu_custom_call.1} parent=43 // pred_region
          %s321 = sand.u32 %s33, 1
          %s322 = scalar_lea.sflag [#allocation3], %s321
          %s323 = sand.u32 %s33, 1
          %s324 = smul.addr %s323, 8
          %s325 = scalar_lea.vmem [#allocation2], %s324
          %s327 = ssub.s32 128, 128
          %328 = vsyncadd %s322, %s327
          %s329 = smul.addr %s23, 128
          %s330 = scalar_lea.hbm %s0, %s329
          %s332 = sshll.u32 %s325, 4
          %s333 = int_to_ptr.vmem [resolvable:$true] %s332
          %335 = dma.hbm_to_vmem [thread:$0]  %s330, 128, %s333, %s322
        $region48: #{tpu_custom_call.1} parent=43 // pred_fallthru
          _
        // Predicated region
        $region49: #{tpu_custom_call.1} parent=43 // pred_check
          %p336 = pneg %p69
        $region50: #{tpu_custom_call.1} parent=43 // pred_check_branch
          %338 = sbr.rel (%p336) target = $region52
        $region51: #{tpu_custom_call.1} parent=43 // pred_region
          %p339 = scmp.lt.s32.totalorder %s23, 1
          %s340 = scalar_select %p339, %s23, 1
          %s341 = scalar_lea.vmem %s1, %s340
        $region52: #{tpu_custom_call.1} parent=43 // pred_fallthru
          _
      $region44: #{tpu_custom_call.1} parent=5 // pred_fallthru
        _
      %p342 = scmp.le.s32.totalorder 1, %s23
      %p343 = scmp.lt.s32.totalorder %s23, 3
      %p344 = pnand %p342, %p343
      %p345 = pneg %p344
      // Predicated region
      $region53: #{tpu_custom_call.1} parent=5 // pred_check
        _
      $region54: #{tpu_custom_call.1} parent=5 // pred_check_branch
        %347 = sbr.rel (%p344) target = $region56
      $region55: #{tpu_custom_call.1} parent=5 // pred_region
        %s348 = ssub.s32 %s23, 1
        %s349 = sand.u32 %s36, 1
        %s350 = scalar_lea.sflag [#allocation3], %s349
        %s351 = sand.u32 %s36, 1
        %s352 = smul.addr %s351, 8
        %s353 = scalar_lea.vmem [#allocation2], %s352
        // Predicated region
        $region57: #{tpu_custom_call.1} parent=55 // pred_check
          %p354 = pneg %p49
        $region58: #{tpu_custom_call.1} parent=55 // pred_check_branch
          %356 = sbr.rel (%p354) target = $region60
        $region59: #{tpu_custom_call.1} parent=55 // pred_region
          %357 = dma.done %s350, 128
        $region60: #{tpu_custom_call.1} parent=55 // pred_fallthru
          _
        // Predicated region
        $region61: #{tpu_custom_call.1} parent=55 // pred_check
          %p358 = pneg %p96
        $region62: #{tpu_custom_call.1} parent=55 // pred_check_branch
          %360 = sbr.rel (%p358) target = $region64
        $region63: #{tpu_custom_call.1} parent=55 // pred_region
          %361 = dma.done [#allocation6], 512
        $region64: #{tpu_custom_call.1} parent=55 // pred_fallthru
          _
        // Predicated region
        $region65: #{tpu_custom_call.1} parent=55 // pred_check
          %p362 = pneg %p117
        $region66: #{tpu_custom_call.1} parent=55 // pred_check_branch
          %364 = sbr.rel (%p362) target = $region68
        $region67: #{tpu_custom_call.1} parent=55 // pred_region
          %365 = dma.done [#allocation6], 512
        $region68: #{tpu_custom_call.1} parent=55 // pred_fallthru
          _
        // Predicated region
        $region69: #{tpu_custom_call.1} parent=55 // pred_check
          %p366 = pneg %p138
        $region70: #{tpu_custom_call.1} parent=55 // pred_check_branch
          %368 = sbr.rel (%p366) target = $region72
        $region71: #{tpu_custom_call.1} parent=55 // pred_region
          %369 = dma.done [#allocation9], 512
        $region72: #{tpu_custom_call.1} parent=55 // pred_fallthru
          _
        %s370 = sand.u32 %s36, 1
        %s371 = scalar_lea.sflag [#allocation3], %s370
        %s372 = sand.u32 %s36, 1
        %s373 = smul.addr %s372, 8
        %s374 = scalar_lea.vmem [#allocation2], %s373
        %p375 = pneg %p49
        %p376 = pneg %p46
        %p377 = scmp.lt.s32.totalorder %s28, 1
        %s378 = scalar_select %p377, %s28, 1
        %s379 = scalar_lea.vmem %s1, %s378
        %p380 = pneg %p75
        %p381 = pneg %p72
        %p382 = pneg %p96
        %p383 = pneg %p93
        %p384 = pneg %p117
        %p385 = pneg %p114
        %p386 = pneg %p138
        %p387 = pneg %p135
        %p388 = pneg %p159
        %p389 = pneg %p156
        %p390 = pneg %p180
        %p391 = pneg %p177
        %p392 = pneg %p201
        %p393 = pneg %p198
        %p394 = pneg %p222
        %p395 = pneg %p219
        %p396 = pneg %p248
        %p397 = pneg %p245
        %s398 = sand.u32 %s235, 1
        %s399 = scalar_lea.sflag [#allocation4], %s398
        %s400 = sand.u32 %s235, 1
        %s401 = scalar_lea.vmem [#allocation10], %s400
        %p402 = scmp.lt.s32.totalorder %s28, 1
        %s403 = scalar_select %p402, %s28, 1
        %s404 = scalar_lea.vmem %s1, %s403
        %v405 = vld [vmem:[%s353] sm:$0xff]
        %v406 = vld [vmem:[%s404] sm:$0x1]
        %v407 = vld [vmem:[#allocation5] sm:$0xff]
        %v408 = vld [vmem:[#allocation5 + $0x8] sm:$0xff]
        %v409 = vld [vmem:[#allocation5 + $0x10] sm:$0xff]
        %v410 = vld [vmem:[#allocation5 + $0x18] sm:$0xff]
        %vm411 = vcmask 261120
        %v413 = vsel %vm411, %v406, 0
        %415 = vmatprep.subr.mxu0 0.0
        %416 = vmatpush1.msra.mxu0 0.0
        %417 = vmatprep.subr.mxu0 0.0
        %418 = vmatpush1.msra.mxu0 0.0
        %419 = vmatprep.subr.mxu0 0.0
        %420 = vmatpush1.msra.mxu0 0.0
        %421 = vmatprep.subr.mxu0 0.0
        %422 = vmatpush1.msra.mxu0 0.0
        %423 = vmatprep.subr.mxu0 0.0
        %424 = vmatpush1.msra.mxu0 0.0
        %425 = vmatprep.subr.mxu0 0.0
        %426 = vmatpush1.msra.mxu0 0.0
        %427 = vmatprep.subr.mxu0 0.0
        %428 = vmatpush1.msra.mxu0 0.0
        %429 = vmatprep.subr.mxu0 0.0
        %430 = vmatpush1.msra.mxu0 0.0
        %431 = vmatprep.subr.mxu0 0.0
        %432 = vmatpush1.msra.mxu0 0.0
        %433 = vmatprep.subr.mxu0 0.0
        %434 = vmatpush1.msra.mxu0 0.0
        %435 = vmatprep.subr.mxu0 0.0
        %436 = vmatpush1.msra.mxu0 0.0
        %437 = vmatprep.subr.mxu0 0.0
        %438 = vmatpush1.msra.mxu0 0.0
        %439 = vmatprep.subr.mxu0 0.0
        %440 = vmatpush1.msra.mxu0 %v410
        %441 = vmatprep.subr.mxu0 0.0
        %442 = vmatpush1.msra.mxu0 %v409
        %443 = vmatprep.subr.mxu0 0.0
        %444 = vmatpush1.msra.mxu0 %v408
        %445 = vmatprep.subr.mxu0 0.0
        %446 = vmatpush1.msra.mxu0 %v407
        %447 = vmatprep.subr.mxu0 0.0
        %448 = vmatpush2.msra.mxu0 0.0
        %449 = vmatprep.subr.mxu0 0.0
        %450 = vmatpush2.msra.mxu0 0.0
        %451 = vmatprep.subr.mxu0 0.0
        %452 = vmatpush2.msra.mxu0 0.0
        %453 = vmatprep.subr.mxu0 0.0
        %454 = vmatpush2.msra.mxu0 0.0
        %455 = vmatprep.subr.mxu0 0.0
        %456 = vmatpush2.msra.mxu0 0.0
        %457 = vmatprep.subr.mxu0 0.0
        %458 = vmatpush2.msra.mxu0 0.0
        %459 = vmatprep.subr.mxu0 0.0
        %460 = vmatpush2.msra.mxu0 0.0
        %461 = vmatprep.subr.mxu0 0.0
        %462 = vmatpush2.msra.mxu0 0.0
        %463 = vmatprep.subr.mxu0 0.0
        %464 = vmatpush2.msra.mxu0 0.0
        %465 = vmatprep.subr.mxu0 0.0
        %466 = vmatpush2.msra.mxu0 0.0
        %467 = vmatprep.subr.mxu0 0.0
        %468 = vmatpush2.msra.mxu0 0.0
        %469 = vmatprep.subr.mxu0 0.0
        %470 = vmatpush2.msra.mxu0 0.0
        %471 = vmatprep.subr.mxu0 0.0
        %472 = vmatpush2.msra.mxu0 0.0
        %473 = vmatprep.subr.mxu0 0.0
        %474 = vmatpush2.msra.mxu0 0.0
        %475 = vmatprep.subr.mxu0 0.0
        %476 = vmatpush2.msra.mxu0 0.0
        %477 = vmatprep.subr.mxu0 0.0
        %478 = vmatpush2.msra.mxu0 0.0
        %479 = vmatprep.mubr.f32.mxu0 0.0
        %480 = vmatmul.mubr.f32.gmra.mxu0 %v413
        %v481 = vpop.f32.mrf.mxu0
        %v482 = vadd.f32 0.0, %v481
        %v483 = vpop.f32.mrf.mxu0
        %484 = vdwg.mxu0
        %v485 = vld [vmem:[#allocation7] sm:$0xff]
        %v486 = vld [vmem:[#allocation7 + $0x8] sm:$0xff]
        %v487 = vld [vmem:[#allocation7 + $0x10] sm:$0xff]
        %v488 = vld [vmem:[#allocation7 + $0x18] sm:$0xff]
        %v490 = vsel %vm411, %v405, 0
        %492 = vmatprep.subr.mxu0 0.0
        %493 = vmatpush1.msra.mxu0 0.0
        %494 = vmatprep.subr.mxu0 0.0
        %495 = vmatpush1.msra.mxu0 0.0
        %496 = vmatprep.subr.mxu0 0.0
        %497 = vmatpush1.msra.mxu0 0.0
        %498 = vmatprep.subr.mxu0 0.0
        %499 = vmatpush1.msra.mxu0 0.0
        %500 = vmatprep.subr.mxu0 0.0
        %501 = vmatpush1.msra.mxu0 0.0
        %502 = vmatprep.subr.mxu0 0.0
        %503 = vmatpush1.msra.mxu0 0.0
        %504 = vmatprep.subr.mxu0 0.0
        %505 = vmatpush1.msra.mxu0 0.0
        %506 = vmatprep.subr.mxu0 0.0
        %507 = vmatpush1.msra.mxu0 0.0
        %508 = vmatprep.subr.mxu0 0.0
        %509 = vmatpush1.msra.mxu0 0.0
        %510 = vmatprep.subr.mxu0 0.0
        %511 = vmatpush1.msra.mxu0 0.0
        %512 = vmatprep.subr.mxu0 0.0
        %513 = vmatpush1.msra.mxu0 0.0
        %514 = vmatprep.subr.mxu0 0.0
        %515 = vmatpush1.msra.mxu0 0.0
        %516 = vmatprep.subr.mxu0 0.0
        %517 = vmatpush1.msra.mxu0 %v488
        %518 = vmatprep.subr.mxu0 0.0
        %519 = vmatpush1.msra.mxu0 %v487
        %520 = vmatprep.subr.mxu0 0.0
        %521 = vmatpush1.msra.mxu0 %v486
        %522 = vmatprep.subr.mxu0 0.0
        %523 = vmatpush1.msra.mxu0 %v485
        %524 = vmatprep.subr.mxu0 0.0
        %525 = vmatpush2.msra.mxu0 0.0
        %526 = vmatprep.subr.mxu0 0.0
        %527 = vmatpush2.msra.mxu0 0.0
        %528 = vmatprep.subr.mxu0 0.0
        %529 = vmatpush2.msra.mxu0 0.0
        %530 = vmatprep.subr.mxu0 0.0
        %531 = vmatpush2.msra.mxu0 0.0
        %532 = vmatprep.subr.mxu0 0.0
        %533 = vmatpush2.msra.mxu0 0.0
        %534 = vmatprep.subr.mxu0 0.0
        %535 = vmatpush2.msra.mxu0 0.0
        %536 = vmatprep.subr.mxu0 0.0
        %537 = vmatpush2.msra.mxu0 0.0
        %538 = vmatprep.subr.mxu0 0.0
        %539 = vmatpush2.msra.mxu0 0.0
        %540 = vmatprep.subr.mxu0 0.0
        %541 = vmatpush2.msra.mxu0 0.0
        %542 = vmatprep.subr.mxu0 0.0
        %543 = vmatpush2.msra.mxu0 0.0
        %544 = vmatprep.subr.mxu0 0.0
        %545 = vmatpush2.msra.mxu0 0.0
        %546 = vmatprep.subr.mxu0 0.0
        %547 = vmatpush2.msra.mxu0 0.0
        %548 = vmatprep.subr.mxu0 0.0
        %549 = vmatpush2.msra.mxu0 0.0
        %550 = vmatprep.subr.mxu0 0.0
        %551 = vmatpush2.msra.mxu0 0.0
        %552 = vmatprep.subr.mxu0 0.0
        %553 = vmatpush2.msra.mxu0 0.0
        %554 = vmatprep.subr.mxu0 0.0
        %555 = vmatpush2.msra.mxu0 0.0
        %556 = vmatprep.mubr.f32.mxu0 0.0
        %557 = vmatmul.mubr.f32.gmra.mxu0 %v490
        %v558 = vpop.f32.mrf.mxu0
        %v559 = vadd.f32 0.0, %v558
        %v560 = vpop.f32.mrf.mxu0
        %561 = vdwg.mxu0
        %v562 = vlaneseq
        %v563 = vshrl.u32 %v562, 7
        %v564 = vsub.s32 0, %v563
        %v565 = vrot.slane %v482, %v564
        %v566 = vmul.f32 %v559, %v565
        %v567 = vld [vmem:[%s7] sm:$0xff]
        %v568 = vld [vmem:[%s7 + $0x8] sm:$0xff]
        %v569 = vld [vmem:[%s7 + $0x10] sm:$0xff]
        %v570 = vld [vmem:[%s7 + $0x18] sm:$0xff]
        %v571 = vld [vmem:[%s7 + $0x20] sm:$0xff]
        %v572 = vld [vmem:[%s7 + $0x28] sm:$0xff]
        %v573 = vld [vmem:[%s7 + $0x30] sm:$0xff]
        %v574 = vld [vmem:[%s7 + $0x38] sm:$0xff]
        %vm575 = vcmask 523264
        %v577 = vsel %vm575, %v566, 0
        %579 = vmatprep.subr.mxu0 0.0
        %580 = vmatpush1.msra.mxu0 0.0
        %581 = vmatprep.subr.mxu0 0.0
        %582 = vmatpush1.msra.mxu0 0.0
        %583 = vmatprep.subr.mxu0 0.0
        %584 = vmatpush1.msra.mxu0 0.0
        %585 = vmatprep.subr.mxu0 0.0
        %586 = vmatpush1.msra.mxu0 0.0
        %587 = vmatprep.subr.mxu0 0.0
        %588 = vmatpush1.msra.mxu0 0.0
        %589 = vmatprep.subr.mxu0 0.0
        %590 = vmatpush1.msra.mxu0 0.0
        %591 = vmatprep.subr.mxu0 0.0
        %592 = vmatpush1.msra.mxu0 0.0
        %593 = vmatprep.subr.mxu0 0.0
        %594 = vmatpush1.msra.mxu0 0.0
        %595 = vmatprep.subr.mxu0 0.0
        %596 = vmatpush1.msra.mxu0 %v574
        %597 = vmatprep.subr.mxu0 0.0
        %598 = vmatpush1.msra.mxu0 %v573
        %599 = vmatprep.subr.mxu0 0.0
        %600 = vmatpush1.msra.mxu0 %v572
        %601 = vmatprep.subr.mxu0 0.0
        %602 = vmatpush1.msra.mxu0 %v571
        %603 = vmatprep.subr.mxu0 0.0
        %604 = vmatpush1.msra.mxu0 %v570
        %605 = vmatprep.subr.mxu0 0.0
        %606 = vmatpush1.msra.mxu0 %v569
        %607 = vmatprep.subr.mxu0 0.0
        %608 = vmatpush1.msra.mxu0 %v568
        %609 = vmatprep.subr.mxu0 0.0
        %610 = vmatpush1.msra.mxu0 %v567
        %611 = vmatprep.subr.mxu0 0.0
        %612 = vmatpush2.msra.mxu0 0.0
        %613 = vmatprep.subr.mxu0 0.0
        %614 = vmatpush2.msra.mxu0 0.0
        %615 = vmatprep.subr.mxu0 0.0
        %616 = vmatpush2.msra.mxu0 0.0
        %617 = vmatprep.subr.mxu0 0.0
        %618 = vmatpush2.msra.mxu0 0.0
        %619 = vmatprep.subr.mxu0 0.0
        %620 = vmatpush2.msra.mxu0 0.0
        %621 = vmatprep.subr.mxu0 0.0
        %622 = vmatpush2.msra.mxu0 0.0
        %623 = vmatprep.subr.mxu0 0.0
        %624 = vmatpush2.msra.mxu0 0.0
        %625 = vmatprep.subr.mxu0 0.0
        %626 = vmatpush2.msra.mxu0 0.0
        %627 = vmatprep.subr.mxu0 0.0
        %628 = vmatpush2.msra.mxu0 0.0
        %629 = vmatprep.subr.mxu0 0.0
        %630 = vmatpush2.msra.mxu0 0.0
        %631 = vmatprep.subr.mxu0 0.0
        %632 = vmatpush2.msra.mxu0 0.0
        %633 = vmatprep.subr.mxu0 0.0
        %634 = vmatpush2.msra.mxu0 0.0
        %635 = vmatprep.subr.mxu0 0.0
        %636 = vmatpush2.msra.mxu0 0.0
        %637 = vmatprep.subr.mxu0 0.0
        %638 = vmatpush2.msra.mxu0 0.0
        %639 = vmatprep.subr.mxu0 0.0
        %640 = vmatpush2.msra.mxu0 0.0
        %641 = vmatprep.subr.mxu0 0.0
        %642 = vmatpush2.msra.mxu0 0.0
        %643 = vmatprep.mubr.f32.mxu0 0.0
        %644 = vmatmul.mubr.f32.gmra.mxu0 %v577
        %v645 = vpop.f32.mrf.mxu0
        %v646 = vadd.f32 0.0, %v645
        %v647 = vpop.f32.mrf.mxu0
        %648 = vdwg.mxu0
        %vm649 = vcmask 31744
        %v650 = vsel %vm649, %v646, -inf
        %v651 = vrot.slane %v650, 4
        %v652 = vmax.f32 %v650, %v651
        %v653 = vrot.slane %v652, 2
        %v654 = vmax.f32 %v652, %v653
        %v655 = vrot.slane %v654, 1
        %v656 = vmax.f32 %v654, %v655
        %v657 = vsub.f32 %v646, %v656
        %v658 = vmul.f32 %v657, 1.442695
        %v659 = vpow.pop %v658
        %v660 = vsel %vm649, %v659, 0.0
        %v661 = vrot.slane %v660, 4
        %v662 = vadd.f32 %v660, %v661
        %v663 = vrot.slane %v662, 2
        %v664 = vadd.f32 %v662, %v663
        %v665 = vrot.slane %v664, 1
        %v666 = vadd.f32 %v664, %v665
        %v667 = vrcp.pop %v666
        %v668 = vmul.f32 %v659, %v667
        %v669 = vld [vmem:[%s8] sm:$0xf]
        %v671 = vsel %vm649, %v668, 0
        %vm673 = vcmask 1043456
        %v675 = vsel %vm673, %v669, 0
        %677 = vmatprep.subr.mxu0 0.0
        %678 = vmatpush1.msra.mxu0 0.0
        %679 = vmatprep.subr.mxu0 0.0
        %680 = vmatpush1.msra.mxu0 0.0
        %681 = vmatprep.subr.mxu0 0.0
        %682 = vmatpush1.msra.mxu0 0.0
        %683 = vmatprep.subr.mxu0 0.0
        %684 = vmatpush1.msra.mxu0 0.0
        %685 = vmatprep.subr.mxu0 0.0
        %686 = vmatpush1.msra.mxu0 0.0
        %687 = vmatprep.subr.mxu0 0.0
        %688 = vmatpush1.msra.mxu0 0.0
        %689 = vmatprep.subr.mxu0 0.0
        %690 = vmatpush1.msra.mxu0 0.0
        %691 = vmatprep.subr.mxu0 0.0
        %692 = vmatpush1.msra.mxu0 0.0
        %693 = vmatprep.subr.mxu0 0.0
        %694 = vmatpush1.msra.mxu0 0.0
        %695 = vmatprep.subr.mxu0 0.0
        %696 = vmatpush1.msra.mxu0 0.0
        %697 = vmatprep.subr.mxu0 0.0
        %698 = vmatpush1.msra.mxu0 0.0
        %699 = vmatprep.subr.mxu0 0.0
        %700 = vmatpush1.msra.mxu0 0.0
        %701 = vmatprep.subr.mxu0 0.0
        %702 = vmatpush1.msra.mxu0 0.0
        %703 = vmatprep.subr.mxu0 0.0
        %704 = vmatpush1.msra.mxu0 0.0
        %705 = vmatprep.subr.mxu0 0.0
        %706 = vmatpush1.msra.mxu0 0.0
        %707 = vmatprep.subr.mxu0 0.0
        %708 = vmatpush1.msra.mxu0 %v675
        %709 = vmatprep.subr.mxu0 0.0
        %710 = vmatpush2.msra.mxu0 0.0
        %711 = vmatprep.subr.mxu0 0.0
        %712 = vmatpush2.msra.mxu0 0.0
        %713 = vmatprep.subr.mxu0 0.0
        %714 = vmatpush2.msra.mxu0 0.0
        %715 = vmatprep.subr.mxu0 0.0
        %716 = vmatpush2.msra.mxu0 0.0
        %717 = vmatprep.subr.mxu0 0.0
        %718 = vmatpush2.msra.mxu0 0.0
        %719 = vmatprep.subr.mxu0 0.0
        %720 = vmatpush2.msra.mxu0 0.0
        %721 = vmatprep.subr.mxu0 0.0
        %722 = vmatpush2.msra.mxu0 0.0
        %723 = vmatprep.subr.mxu0 0.0
        %724 = vmatpush2.msra.mxu0 0.0
        %725 = vmatprep.subr.mxu0 0.0
        %726 = vmatpush2.msra.mxu0 0.0
        %727 = vmatprep.subr.mxu0 0.0
        %728 = vmatpush2.msra.mxu0 0.0
        %729 = vmatprep.subr.mxu0 0.0
        %730 = vmatpush2.msra.mxu0 0.0
        %731 = vmatprep.subr.mxu0 0.0
        %732 = vmatpush2.msra.mxu0 0.0
        %733 = vmatprep.subr.mxu0 0.0
        %734 = vmatpush2.msra.mxu0 0.0
        %735 = vmatprep.subr.mxu0 0.0
        %736 = vmatpush2.msra.mxu0 0.0
        %737 = vmatprep.subr.mxu0 0.0
        %738 = vmatpush2.msra.mxu0 0.0
        %739 = vmatprep.subr.mxu0 0.0
        %740 = vmatpush2.msra.mxu0 0.0
        %741 = vmatprep.mubr.f32.mxu0 0.0
        %742 = vmatmul.mubr.f32.gmra.mxu0 %v671
        %v743 = vpop.f32.mrf.mxu0
        %v744 = vadd.f32 0.0, %v743
        %v745 = vpop.f32.mrf.mxu0
        %746 = vdwg.mxu0
        %v747 = vld [vmem:[#allocation8] sm:$0xff]
        %v748 = vld [vmem:[#allocation8 + $0x8] sm:$0xff]
        %v749 = vld [vmem:[#allocation8 + $0x10] sm:$0xff]
        %v750 = vld [vmem:[#allocation8 + $0x18] sm:$0xff]
        %751 = vmatprep.subr.mxu0 0.0
        %752 = vmatpush1.msra.mxu0 0.0
        %753 = vmatprep.subr.mxu0 0.0
        %754 = vmatpush1.msra.mxu0 0.0
        %755 = vmatprep.subr.mxu0 0.0
        %756 = vmatpush1.msra.mxu0 0.0
        %757 = vmatprep.subr.mxu0 0.0
        %758 = vmatpush1.msra.mxu0 0.0
        %759 = vmatprep.subr.mxu0 0.0
        %760 = vmatpush1.msra.mxu0 0.0
        %761 = vmatprep.subr.mxu0 0.0
        %762 = vmatpush1.msra.mxu0 0.0
        %763 = vmatprep.subr.mxu0 0.0
        %764 = vmatpush1.msra.mxu0 0.0
        %765 = vmatprep.subr.mxu0 0.0
        %766 = vmatpush1.msra.mxu0 0.0
        %767 = vmatprep.subr.mxu0 0.0
        %768 = vmatpush1.msra.mxu0 0.0
        %769 = vmatprep.subr.mxu0 0.0
        %770 = vmatpush1.msra.mxu0 0.0
        %771 = vmatprep.subr.mxu0 0.0
        %772 = vmatpush1.msra.mxu0 0.0
        %773 = vmatprep.subr.mxu0 0.0
        %774 = vmatpush1.msra.mxu0 0.0
        %775 = vmatprep.subr.mxu0 0.0
        %776 = vmatpush1.msra.mxu0 %v750
        %777 = vmatprep.subr.mxu0 0.0
        %778 = vmatpush1.msra.mxu0 %v749
        %779 = vmatprep.subr.mxu0 0.0
        %780 = vmatpush1.msra.mxu0 %v748
        %781 = vmatprep.subr.mxu0 0.0
        %782 = vmatpush1.msra.mxu0 %v747
        %783 = vmatprep.subr.mxu0 0.0
        %784 = vmatpush2.msra.mxu0 0.0
        %785 = vmatprep.subr.mxu0 0.0
        %786 = vmatpush2.msra.mxu0 0.0
        %787 = vmatprep.subr.mxu0 0.0
        %788 = vmatpush2.msra.mxu0 0.0
        %789 = vmatprep.subr.mxu0 0.0
        %790 = vmatpush2.msra.mxu0 0.0
        %791 = vmatprep.subr.mxu0 0.0
        %792 = vmatpush2.msra.mxu0 0.0
        %793 = vmatprep.subr.mxu0 0.0
        %794 = vmatpush2.msra.mxu0 0.0
        %795 = vmatprep.subr.mxu0 0.0
        %796 = vmatpush2.msra.mxu0 0.0
        %797 = vmatprep.subr.mxu0 0.0
        %798 = vmatpush2.msra.mxu0 0.0
        %799 = vmatprep.subr.mxu0 0.0
        %800 = vmatpush2.msra.mxu0 0.0
        %801 = vmatprep.subr.mxu0 0.0
        %802 = vmatpush2.msra.mxu0 0.0
        %803 = vmatprep.subr.mxu0 0.0
        %804 = vmatpush2.msra.mxu0 0.0
        %805 = vmatprep.subr.mxu0 0.0
        %806 = vmatpush2.msra.mxu0 0.0
        %807 = vmatprep.subr.mxu0 0.0
        %808 = vmatpush2.msra.mxu0 0.0
        %809 = vmatprep.subr.mxu0 0.0
        %810 = vmatpush2.msra.mxu0 0.0
        %811 = vmatprep.subr.mxu0 0.0
        %812 = vmatpush2.msra.mxu0 0.0
        %813 = vmatprep.subr.mxu0 0.0
        %814 = vmatpush2.msra.mxu0 0.0
        %815 = vmatprep.mubr.f32.mxu0 0.0
        %816 = vmatmul.mubr.f32.gmra.mxu0 %v490
        %v817 = vpop.f32.mrf.mxu0
        %v818 = vadd.f32 0.0, %v817
        %v819 = vpop.f32.mrf.mxu0
        %820 = vdwg.mxu0
        %v821 = vmul.f32 %v744, %v818
        %v822 = vsel %vm575, %v821, 0.0
        %v823 = vrot.slane %v822, 4
        %v824 = vadd.f32 %v822, %v823
        %v825 = vrot.slane %v824, 2
        %v826 = vadd.f32 %v824, %v825
        %v827 = vrot.slane %v826, 1
        %v828 = vadd.f32 %v826, %v827
        %v829 = vld [vmem:[%s5] sm:$0xff]
        %v830 = vld [vmem:[%s5 + $0x8] sm:$0xff]
        %v831 = vld [vmem:[%s5 + $0x10] sm:$0xff]
        %v832 = vld [vmem:[%s5 + $0x18] sm:$0xff]
        %v833 = vld [vmem:[%s5 + $0x20] sm:$0xff]
        %v834 = vld [vmem:[%s5 + $0x28] sm:$0xff]
        %v835 = vld [vmem:[%s5 + $0x30] sm:$0xff]
        %v836 = vld [vmem:[%s5 + $0x38] sm:$0xff]
        %v837 = vld [vmem:[%s6] sm:$0x1]
        %v839 = vsel %vm575, %v828, 0
        %841 = vmatprep.subr.mxu0 0.0
        %842 = vmatpush1.msra.mxu0 0.0
        %843 = vmatprep.subr.mxu0 0.0
        %844 = vmatpush1.msra.mxu0 0.0
        %845 = vmatprep.subr.mxu0 0.0
        %846 = vmatpush1.msra.mxu0 0.0
        %847 = vmatprep.subr.mxu0 0.0
        %848 = vmatpush1.msra.mxu0 0.0
        %849 = vmatprep.subr.mxu0 0.0
        %850 = vmatpush1.msra.mxu0 0.0
        %851 = vmatprep.subr.mxu0 0.0
        %852 = vmatpush1.msra.mxu0 0.0
        %853 = vmatprep.subr.mxu0 0.0
        %854 = vmatpush1.msra.mxu0 0.0
        %855 = vmatprep.subr.mxu0 0.0
        %856 = vmatpush1.msra.mxu0 0.0
        %857 = vmatprep.subr.mxu0 0.0
        %858 = vmatpush1.msra.mxu0 %v836
        %859 = vmatprep.subr.mxu0 0.0
        %860 = vmatpush1.msra.mxu0 %v835
        %861 = vmatprep.subr.mxu0 0.0
        %862 = vmatpush1.msra.mxu0 %v834
        %863 = vmatprep.subr.mxu0 0.0
        %864 = vmatpush1.msra.mxu0 %v833
        %865 = vmatprep.subr.mxu0 0.0
        %866 = vmatpush1.msra.mxu0 %v832
        %867 = vmatprep.subr.mxu0 0.0
        %868 = vmatpush1.msra.mxu0 %v831
        %869 = vmatprep.subr.mxu0 0.0
        %870 = vmatpush1.msra.mxu0 %v830
        %871 = vmatprep.subr.mxu0 0.0
        %872 = vmatpush1.msra.mxu0 %v829
        %873 = vmatprep.subr.mxu0 0.0
        %874 = vmatpush2.msra.mxu0 0.0
        %875 = vmatprep.subr.mxu0 0.0
        %876 = vmatpush2.msra.mxu0 0.0
        %877 = vmatprep.subr.mxu0 0.0
        %878 = vmatpush2.msra.mxu0 0.0
        %879 = vmatprep.subr.mxu0 0.0
        %880 = vmatpush2.msra.mxu0 0.0
        %881 = vmatprep.subr.mxu0 0.0
        %882 = vmatpush2.msra.mxu0 0.0
        %883 = vmatprep.subr.mxu0 0.0
        %884 = vmatpush2.msra.mxu0 0.0
        %885 = vmatprep.subr.mxu0 0.0
        %886 = vmatpush2.msra.mxu0 0.0
        %887 = vmatprep.subr.mxu0 0.0
        %888 = vmatpush2.msra.mxu0 0.0
        %889 = vmatprep.subr.mxu0 0.0
        %890 = vmatpush2.msra.mxu0 0.0
        %891 = vmatprep.subr.mxu0 0.0
        %892 = vmatpush2.msra.mxu0 0.0
        %893 = vmatprep.subr.mxu0 0.0
        %894 = vmatpush2.msra.mxu0 0.0
        %895 = vmatprep.subr.mxu0 0.0
        %896 = vmatpush2.msra.mxu0 0.0
        %897 = vmatprep.subr.mxu0 0.0
        %898 = vmatpush2.msra.mxu0 0.0
        %899 = vmatprep.subr.mxu0 0.0
        %900 = vmatpush2.msra.mxu0 0.0
        %901 = vmatprep.subr.mxu0 0.0
        %902 = vmatpush2.msra.mxu0 0.0
        %903 = vmatprep.subr.mxu0 0.0
        %904 = vmatpush2.msra.mxu0 0.0
        %905 = vmatprep.mubr.f32.mxu0 0.0
        %906 = vmatmul.mubr.f32.gmra.mxu0 %v839
        %v907 = vpop.f32.mrf.mxu0
        %v908 = vadd.f32 %v837, %v907
        %v909 = vpop.f32.mrf.mxu0
        %910 = vdwg.mxu0
        %911 = vst [vmem:[%s401] sm:$0x1] %v908
        %s912 = sand.u32 %s235, 1
        %s913 = scalar_lea.sflag [#allocation4], %s912
        %s914 = sand.u32 %s235, 1
        %s915 = scalar_lea.vmem [#allocation10], %s914
        // Predicated region
        $region73: #{tpu_custom_call.1} parent=55 // pred_check
          %p916 = pneg %p245
        $region74: #{tpu_custom_call.1} parent=55 // pred_check_branch
          %918 = sbr.rel (%p916) target = $region76
        $region75: #{tpu_custom_call.1} parent=55 // pred_region
          %s920 = ssub.s32 16, 16
          %921 = vsyncadd %s913, %s920
          %s922 = smul.addr %s28, 16
          %s923 = scalar_lea.hbm %s9, %s922
          %s925 = sshll.u32 %s915, 4
          %s926 = int_to_ptr.vmem [resolvable:$true] %s925
          %928 = dma.vmem_to_hbm [thread:$0]  %s926, 16, %s923, %s913
        $region76: #{tpu_custom_call.1} parent=55 // pred_fallthru
          _
      $region56: #{tpu_custom_call.1} parent=5 // pred_fallthru
        _
      %p929 = scmp.le.s32.totalorder 2, %s23
      // Predicated region
      $region77: #{tpu_custom_call.1} parent=5 // pred_check
        %p930 = pneg %p929
      $region78: #{tpu_custom_call.1} parent=5 // pred_check_branch
        %932 = sbr.rel (%p930) target = $region80
      $region79: #{tpu_custom_call.1} parent=5 // pred_region
        %s933 = ssub.s32 %s23, 2
        // Predicated region
        $region81: #{tpu_custom_call.1} parent=79 // pred_check
          %p934 = pneg %p251
        $region82: #{tpu_custom_call.1} parent=79 // pred_check_branch
          %936 = sbr.rel (%p934) target = $region84
        $region83: #{tpu_custom_call.1} parent=79 // pred_region
          %s937 = sand.u32 %s236, 1
          %s938 = scalar_lea.sflag [#allocation4], %s937
          %s939 = sand.u32 %s236, 1
          %s940 = scalar_lea.vmem [#allocation10], %s939
          %941 = dma.done %s938, 16
        $region84: #{tpu_custom_call.1} parent=79 // pred_fallthru
          _
      $region80: #{tpu_custom_call.1} parent=5 // pred_fallthru
        _
    $region6: #{tpu_custom_call.1} parent=1 // loop_footer
      %s27 = sadd.s32 1, %s23
    $region7: #{tpu_custom_call.1} parent=1 // loop_footer_branch
      %22 = sbr.rel target = $region3
    $region8: #{tpu_custom_call.1} parent=1 // loop_exit
      _
    %942 = vsyncpa [#allocation3], 1
    %s943 = scalar_lea.sflag [#allocation3], 1
    %944 = vsyncpa %s943, 1
    %945 = vsyncpa [#allocation6], 1
    %946 = vsyncpa [#allocation9], 1
    %947 = vsyncpa [#allocation4], 1
    %s948 = scalar_lea.sflag [#allocation4], 1
    %949 = vsyncpa %s948, 1

// kernel: tpu_custom_call.1
$region0: #{tpu_custom_call.1}
  #allocation0 [shape = 'u32[]', space=smem, size = 0x4, offset = 0x4, fixed_abs, tag = 'smem constant byte address 0x4 - core index']
  #allocation1 [shape = 'u32[144,128]{1,0:T(1,128)}', space=vmem, size = 0x12000, scoped, tag = 'internal scratch']
  %s0 = inlined_call_operand.hbm [shape: f32[2,8,32], index: 0, kind: input, shape index: {}]
  %s1 = inlined_call_operand.vmem [shape: f32[2,1,32], index: 1, kind: input, shape index: {}]
  %s2 = inlined_call_operand.hbm [shape: f32[32,64], index: 2, kind: input, shape index: {}]
  %s3 = inlined_call_operand.hbm [shape: f32[32,64], index: 3, kind: input, shape index: {}]
  %s4 = inlined_call_operand.hbm [shape: f32[32,64], index: 4, kind: input, shape index: {}]
  %s5 = inlined_call_operand.vmem [shape: f32[64,128], index: 5, kind: input, shape index: {}]
  %s6 = inlined_call_operand.vmem [shape: f32[1,128], index: 6, kind: input, shape index: {}]
  %s7 = inlined_call_operand.vmem [shape: f32[64,4], index: 7, kind: input, shape index: {}]
  %s8 = inlined_call_operand.vmem [shape: f32[4,64], index: 8, kind: input, shape index: {}]
  %s9 = inlined_call_operand.hbm [shape: f32[2,1,128], index: 9, kind: output, shape index: {}]
  %s10 = sld [smem:[#allocation0]]
  $region85: #{tpu_custom_call.1} parent=0
    _
  %s12 = ssub.s32 1, %s10
  %s13 = scalar_select 0, %s12, %s10
  $region1: #{tpu_custom_call.1} parent=0
    #allocation2 [shape = 'u8[8192]{0}', space=vmem, size = 0x2000, scoped, tag = 'input window, operand 0']
    #allocation3 [shape = 's32[2]{0}', space=sflag, size = 0x8, scoped, tag = 'scoped memory for tpu_custom_call.1']
    #allocation4 [shape = 's32[2]{0}', space=sflag, size = 0x8, scoped, tag = 'scoped memory for tpu_custom_call.1']
    #allocation5 [shape = 'u8[16384]{0}', space=vmem, size = 0x4000, scoped, tag = 'input window, operand 2, single buffered']
    #allocation6 [shape = 's32[1]{0}', space=sflag, size = 0x4, scoped, tag = 'scoped memory for tpu_custom_call.1']
    #allocation7 [shape = 'u8[16384]{0}', space=vmem, size = 0x4000, scoped, tag = 'input window, operand 3, single buffered']
    #allocation8 [shape = 'u8[16384]{0}', space=vmem, size = 0x4000, scoped, tag = 'input window, operand 4, single buffered']
    #allocation9 [shape = 's32[1]{0}', space=sflag, size = 0x4, scoped, tag = 'scoped memory for tpu_custom_call.1']
    #allocation10 [shape = 'u8[1024]{0}', space=vmem, size = 0x400, scoped, tag = 'output window, operand 0']
    %14 = vsyncpa [#allocation3], 0
    %s15 = scalar_lea.sflag [#allocation3], 1
    %16 = vsyncpa %s15, 0
    %17 = vsyncpa [#allocation6], 0
    %18 = vsyncpa [#allocation9], 0
    %19 = vsyncpa [#allocation4], 0
    %s20 = scalar_lea.sflag [#allocation4], 1
    %21 = vsyncpa %s20, 0
    loop: start=0, step=1, limit=4
    $region2: #{tpu_custom_call.1} parent=1 // loop_pre_header
      _
    $region3: #{tpu_custom_call.1} parent=1 // loop_header
      %s23 = sphi 0, %s27
      %p24 = scmp.ge.s32.totalorder %s23, 4
      %s33 = sphi 0, %s35
      %s36 = sphi 0, %s33
      %s37 = sphi 0, %s36
      %s53 = sphi 0, %s37
      %s59 = sphi 0, %s61
      %s62 = sphi 0, %s59
      %s63 = sphi 0, %s62
      %s79 = sphi 0, %s63
      %s83 = sphi 0, %s83
      %s85 = sphi 0, %s83
      %s86 = sphi 0, %s85
      %s100 = sphi 0, %s86
      %s104 = sphi 0, %s104
      %s106 = sphi 0, %s104
      %s107 = sphi 0, %s106
      %s121 = sphi 0, %s107
      %s125 = sphi 0, %s125
      %s127 = sphi 0, %s125
      %s128 = sphi 0, %s127
      %s142 = sphi 0, %s128
      %s146 = sphi 0, %s146
      %s148 = sphi 0, %s146
      %s149 = sphi 0, %s148
      %s163 = sphi 0, %s149
      %s167 = sphi 0, %s167
      %s169 = sphi 0, %s167
      %s170 = sphi 0, %s169
      %s184 = sphi 0, %s170
      %s188 = sphi 0, %s188
      %s190 = sphi 0, %s188
      %s191 = sphi 0, %s190
      %s205 = sphi 0, %s191
      %s209 = sphi 0, %s209
      %s211 = sphi 0, %s209
      %s212 = sphi 0, %s211
      %s226 = sphi 0, %s212
      %s232 = sphi 0, %s234
      %s235 = sphi 0, %s232
      %s236 = sphi 0, %s235
      %s252 = sphi 0, %s236
    $region4: #{tpu_custom_call.1} parent=1 // loop_header_branch
      %26 = sbr.rel (%p24) target = $region8
    $region5: #{tpu_custom_call.1} parent=1 // loop_body
      %s28 = ssub.s32 %s23, 1
      %s29 = ssub.s32 %s23, 2
      %s30 = sadd.s32 %s23, 1
      %s31 = ssub.s32 %s23, %s30
      %p32 = scmp.eq.s32.totalorder %s31, 0
      %s34 = sadd.s32 %s33, 1
      %s35 = scalar_select %p32, %s33, %s34
      %p38 = pneg %p32
      %p39 = scmp.eq.s32.totalorder %s23, 1
      %p40 = por %p38, %p39
      %p41 = scmp.ne.s32.totalorder %s33, %s36
      %p42 = scmp.eq.s32.totalorder %s23, 0
      %p43 = por %p41, %p42
      %p44 = scmp.ne.s32.totalorder %s33, %s36
      %p45 = scmp.eq.s32.totalorder %s28, 1
      %p46 = por %p44, %p45
      %p47 = scmp.ne.s32.totalorder %s36, %s37
      %p48 = scmp.eq.s32.totalorder %s28, 0
      %p49 = por %p47, %p48
      %p50 = scmp.ne.s32.totalorder %s36, %s37
      %p51 = scmp.eq.s32.totalorder %s29, 1
      %p52 = por %p50, %p51
      %p54 = scmp.ne.s32.totalorder %s37, %s53
      %p55 = scmp.eq.s32.totalorder %s29, 0
      %p56 = por %p54, %p55
      %s57 = ssub.s32 %s23, %s30
      %p58 = scmp.eq.s32.totalorder %s57, 0
      %s60 = sadd.s32 %s59, 1
      %s61 = scalar_select %p58, %s59, %s60
      %p64 = pneg %p58
      %p65 = scmp.eq.s32.totalorder %s23, 1
      %p66 = por %p64, %p65
      %p67 = scmp.ne.s32.totalorder %s59, %s62
      %p68 = scmp.eq.s32.totalorder %s23, 0
      %p69 = por %p67, %p68
      %p70 = scmp.ne.s32.totalorder %s59, %s62
      %p71 = scmp.eq.s32.totalorder %s28, 1
      %p72 = por %p70, %p71
      %p73 = scmp.ne.s32.totalorder %s62, %s63
      %p74 = scmp.eq.s32.totalorder %s28, 0
      %p75 = por %p73, %p74
      %p76 = scmp.ne.s32.totalorder %s62, %s63
      %p77 = scmp.eq.s32.totalorder %s29, 1
      %p78 = por %p76, %p77
      %p80 = scmp.ne.s32.totalorder %s63, %s79
      %p81 = scmp.eq.s32.totalorder %s29, 0
      %p82 = por %p80, %p81
      %s84 = sadd.s32 %s83, 1
      %p87 = scmp.eq.s32.totalorder %s23, 1
      %p88 = scmp.ne.s32.totalorder %s83, %s85
      %p89 = scmp.eq.s32.totalorder %s23, 0
      %p90 = por %p88, %p89
      %p91 = scmp.ne.s32.totalorder %s83, %s85
      %p92 = scmp.eq.s32.totalorder %s28, 1
      %p93 = por %p91, %p92
      %p94 = scmp.ne.s32.totalorder %s85, %s86
      %p95 = scmp.eq.s32.totalorder %s28, 0
      %p96 = por %p94, %p95
      %p97 = scmp.ne.s32.totalorder %s85, %s86
      %p98 = scmp.eq.s32.totalorder %s29, 1
      %p99 = por %p97, %p98
      %p101 = scmp.ne.s32.totalorder %s86, %s100
      %p102 = scmp.eq.s32.totalorder %s29, 0
      %p103 = por %p101, %p102
      %s105 = sadd.s32 %s104, 1
      %p108 = scmp.eq.s32.totalorder %s23, 1
      %p109 = scmp.ne.s32.totalorder %s104, %s106
      %p110 = scmp.eq.s32.totalorder %s23, 0
      %p111 = por %p109, %p110
      %p112 = scmp.ne.s32.totalorder %s104, %s106
      %p113 = scmp.eq.s32.totalorder %s28, 1
      %p114 = por %p112, %p113
      %p115 = scmp.ne.s32.totalorder %s106, %s107
      %p116 = scmp.eq.s32.totalorder %s28, 0
      %p117 = por %p115, %p116
      %p118 = scmp.ne.s32.totalorder %s106, %s107
      %p119 = scmp.eq.s32.totalorder %s29, 1
      %p120 = por %p118, %p119
      %p122 = scmp.ne.s32.totalorder %s107, %s121
      %p123 = scmp.eq.s32.totalorder %s29, 0
      %p124 = por %p122, %p123
      %s126 = sadd.s32 %s125, 1
      %p129 = scmp.eq.s32.totalorder %s23, 1
      %p130 = scmp.ne.s32.totalorder %s125, %s127
      %p131 = scmp.eq.s32.totalorder %s23, 0
      %p132 = por %p130, %p131
      %p133 = scmp.ne.s32.totalorder %s125, %s127
      %p134 = scmp.eq.s32.totalorder %s28, 1
      %p135 = por %p133, %p134
      %p136 = scmp.ne.s32.totalorder %s127, %s128
      %p137 = scmp.eq.s32.totalorder %s28, 0
      %p138 = por %p136, %p137
      %p139 = scmp.ne.s32.totalorder %s127, %s128
      %p140 = scmp.eq.s32.totalorder %s29, 1
      %p141 = por %p139, %p140
      %p143 = scmp.ne.s32.totalorder %s128, %s142
      %p144 = scmp.eq.s32.totalorder %s29, 0
      %p145 = por %p143, %p144
      %s147 = sadd.s32 %s146, 1
      %p150 = scmp.eq.s32.totalorder %s23, 1
      %p151 = scmp.ne.s32.totalorder %s146, %s148
      %p152 = scmp.eq.s32.totalorder %s23, 0
      %p153 = por %p151, %p152
      %p154 = scmp.ne.s32.totalorder %s146, %s148
      %p155 = scmp.eq.s32.totalorder %s28, 1
      %p156 = por %p154, %p155
      %p157 = scmp.ne.s32.totalorder %s148, %s149
      %p158 = scmp.eq.s32.totalorder %s28, 0
      %p159 = por %p157, %p158
      %p160 = scmp.ne.s32.totalorder %s148, %s149
      %p161 = scmp.eq.s32.totalorder %s29, 1
      %p162 = por %p160, %p161
      %p164 = scmp.ne.s32.totalorder %s149, %s163
      %p165 = scmp.eq.s32.totalorder %s29, 0
      %p166 = por %p164, %p165
      %s168 = sadd.s32 %s167, 1
      %p171 = scmp.eq.s32.totalorder %s23, 1
      %p172 = scmp.ne.s32.totalorder %s167, %s169
      %p173 = scmp.eq.s32.totalorder %s23, 0
      %p174 = por %p172, %p173
      %p175 = scmp.ne.s32.totalorder %s167, %s169
      %p176 = scmp.eq.s32.totalorder %s28, 1
      %p177 = por %p175, %p176
      %p178 = scmp.ne.s32.totalorder %s169, %s170
      %p179 = scmp.eq.s32.totalorder %s28, 0
      %p180 = por %p178, %p179
      %p181 = scmp.ne.s32.totalorder %s169, %s170
      %p182 = scmp.eq.s32.totalorder %s29, 1
      %p183 = por %p181, %p182
      %p185 = scmp.ne.s32.totalorder %s170, %s184
      %p186 = scmp.eq.s32.totalorder %s29, 0
      %p187 = por %p185, %p186
      %s189 = sadd.s32 %s188, 1
      %p192 = scmp.eq.s32.totalorder %s23, 1
      %p193 = scmp.ne.s32.totalorder %s188, %s190
      %p194 = scmp.eq.s32.totalorder %s23, 0
      %p195 = por %p193, %p194
      %p196 = scmp.ne.s32.totalorder %s188, %s190
      %p197 = scmp.eq.s32.totalorder %s28, 1
      %p198 = por %p196, %p197
      %p199 = scmp.ne.s32.totalorder %s190, %s191
      %p200 = scmp.eq.s32.totalorder %s28, 0
      %p201 = por %p199, %p200
      %p202 = scmp.ne.s32.totalorder %s190, %s191
      %p203 = scmp.eq.s32.totalorder %s29, 1
      %p204 = por %p202, %p203
      %p206 = scmp.ne.s32.totalorder %s191, %s205
      %p207 = scmp.eq.s32.totalorder %s29, 0
      %p208 = por %p206, %p207
      %s210 = sadd.s32 %s209, 1
      %p213 = scmp.eq.s32.totalorder %s23, 1
      %p214 = scmp.ne.s32.totalorder %s209, %s211
      %p215 = scmp.eq.s32.totalorder %s23, 0
      %p216 = por %p214, %p215
      %p217 = scmp.ne.s32.totalorder %s209, %s211
      %p218 = scmp.eq.s32.totalorder %s28, 1
      %p219 = por %p217, %p218
      %p220 = scmp.ne.s32.totalorder %s211, %s212
      %p221 = scmp.eq.s32.totalorder %s28, 0
      %p222 = por %p220, %p221
      %p223 = scmp.ne.s32.totalorder %s211, %s212
      %p224 = scmp.eq.s32.totalorder %s29, 1
      %p225 = por %p223, %p224
      %p227 = scmp.ne.s32.totalorder %s212, %s226
      %p228 = scmp.eq.s32.totalorder %s29, 0
      %p229 = por %p227, %p228
      %s230 = ssub.s32 %s23, %s30
      %p231 = scmp.eq.s32.totalorder %s230, 0
      %s233 = sadd.s32 %s232, 1
      %s234 = scalar_select %p231, %s232, %s233
      %p237 = pneg %p231
      %p238 = scmp.eq.s32.totalorder %s23, 1
      %p239 = por %p237, %p238
      %p240 = scmp.ne.s32.totalorder %s232, %s235
      %p241 = scmp.eq.s32.totalorder %s23, 0
      %p242 = por %p240, %p241
      %p243 = scmp.ne.s32.totalorder %s232, %s235
      %p244 = scmp.eq.s32.totalorder %s28, 1
      %p245 = por %p243, %p244
      %p246 = scmp.ne.s32.totalorder %s235, %s236
      %p247 = scmp.eq.s32.totalorder %s28, 0
      %p248 = por %p246, %p247
      %p249 = scmp.ne.s32.totalorder %s235, %s236
      %p250 = scmp.eq.s32.totalorder %s29, 1
      %p251 = por %p249, %p250
      %p253 = scmp.ne.s32.totalorder %s236, %s252
      %p254 = scmp.eq.s32.totalorder %s29, 0
      %p255 = por %p253, %p254
      %p256 = scmp.le.s32.totalorder 1, %s23
      %p257 = scmp.lt.s32.totalorder %s23, 3
      %p258 = pnand %p256, %p257
      %p259 = pneg %p258
      // Predicated region
      $region9: #{tpu_custom_call.1} parent=5 // pred_check
        _
      $region10: #{tpu_custom_call.1} parent=5 // pred_check_branch
        %261 = sbr.rel (%p258) target = $region12
      $region11: #{tpu_custom_call.1} parent=5 // pred_region
        %s262 = ssub.s32 %s23, 1
        // Predicated region
        $region13: #{tpu_custom_call.1} parent=11 // pred_check
          %p263 = pneg %p96
        $region14: #{tpu_custom_call.1} parent=11 // pred_check_branch
          %265 = sbr.rel (%p263) target = $region16
        $region15: #{tpu_custom_call.1} parent=11 // pred_region
          %s267 = ssub.s32 512, 512
          %268 = vsyncadd [#allocation6], %s267
          %s269 = sshll.u32 [#allocation5], 4
          %s270 = int_to_ptr.vmem [resolvable:$true] %s269
          %275 = dma.hbm_to_vmem [thread:$0]  %s2, 512, %s270, [#allocation6], 128, 128, 8
        $region16: #{tpu_custom_call.1} parent=11 // pred_fallthru
          _
        // Predicated region
        $region17: #{tpu_custom_call.1} parent=11 // pred_check
          %p276 = pneg %p117
        $region18: #{tpu_custom_call.1} parent=11 // pred_check_branch
          %278 = sbr.rel (%p276) target = $region20
        $region19: #{tpu_custom_call.1} parent=11 // pred_region
          %s280 = ssub.s32 512, 512
          %281 = vsyncadd [#allocation6], %s280
          %s282 = sshll.u32 [#allocation7], 4
          %s283 = int_to_ptr.vmem [resolvable:$true] %s282
          %288 = dma.hbm_to_vmem [thread:$0]  %s3, 512, %s283, [#allocation6], 128, 128, 8
        $region20: #{tpu_custom_call.1} parent=11 // pred_fallthru
          _
        // Predicated region
        $region21: #{tpu_custom_call.1} parent=11 // pred_check
          %p289 = pneg %p138
        $region22: #{tpu_custom_call.1} parent=11 // pred_check_branch
          %291 = sbr.rel (%p289) target = $region24
        $region23: #{tpu_custom_call.1} parent=11 // pred_region
          %s293 = ssub.s32 512, 512
          %294 = vsyncadd [#allocation9], %s293
          %s295 = sshll.u32 [#allocation8], 4
          %s296 = int_to_ptr.vmem [resolvable:$true] %s295
          %301 = dma.hbm_to_vmem [thread:$0]  %s4, 512, %s296, [#allocation9], 128, 128, 8
        $region24: #{tpu_custom_call.1} parent=11 // pred_fallthru
          _
        // Predicated region
        $region25: #{tpu_custom_call.1} parent=11 // pred_check
          %p302 = pneg %p159
        $region26: #{tpu_custom_call.1} parent=11 // pred_check_branch
          %304 = sbr.rel (%p302) target = $region28
        $region27: #{tpu_custom_call.1} parent=11 // pred_region
          _
        $region28: #{tpu_custom_call.1} parent=11 // pred_fallthru
          _
        // Predicated region
        $region29: #{tpu_custom_call.1} parent=11 // pred_check
          %p305 = pneg %p180
        $region30: #{tpu_custom_call.1} parent=11 // pred_check_branch
          %307 = sbr.rel (%p305) target = $region32
        $region31: #{tpu_custom_call.1} parent=11 // pred_region
          _
        $region32: #{tpu_custom_call.1} parent=11 // pred_fallthru
          _
        // Predicated region
        $region33: #{tpu_custom_call.1} parent=11 // pred_check
          %p308 = pneg %p201
        $region34: #{tpu_custom_call.1} parent=11 // pred_check_branch
          %310 = sbr.rel (%p308) target = $region36
        $region35: #{tpu_custom_call.1} parent=11 // pred_region
          _
        $region36: #{tpu_custom_call.1} parent=11 // pred_fallthru
          _
        // Predicated region
        $region37: #{tpu_custom_call.1} parent=11 // pred_check
          %p311 = pneg %p222
        $region38: #{tpu_custom_call.1} parent=11 // pred_check_branch
          %313 = sbr.rel (%p311) target = $region40
        $region39: #{tpu_custom_call.1} parent=11 // pred_region
          _
        $region40: #{tpu_custom_call.1} parent=11 // pred_fallthru
          _
      $region12: #{tpu_custom_call.1} parent=5 // pred_fallthru
        _
      %p314 = scmp.lt.s32.totalorder %s23, 2
      // Predicated region
      $region41: #{tpu_custom_call.1} parent=5 // pred_check
        %p315 = pneg %p314
      $region42: #{tpu_custom_call.1} parent=5 // pred_check_branch
        %317 = sbr.rel (%p315) target = $region44
      $region43: #{tpu_custom_call.1} parent=5 // pred_region
        // Predicated region
        $region45: #{tpu_custom_call.1} parent=43 // pred_check
          %p318 = pneg %p43
        $region46: #{tpu_custom_call.1} parent=43 // pred_check_branch
          %320 = sbr.rel (%p318) target = $region48
        $region47: #{tpu_custom_call.1} parent=43 // pred_region
          %s321 = sand.u32 %s33, 1
          %s322 = scalar_lea.sflag [#allocation3], %s321
          %s323 = sand.u32 %s33, 1
          %s324 = smul.addr %s323, 8
          %s325 = scalar_lea.vmem [#allocation2], %s324
          %s327 = ssub.s32 128, 128
          %328 = vsyncadd %s322, %s327
          %s329 = smul.addr %s23, 128
          %s330 = scalar_lea.hbm %s0, %s329
          %s332 = sshll.u32 %s325, 4
          %s333 = int_to_ptr.vmem [resolvable:$true] %s332
          %335 = dma.hbm_to_vmem [thread:$0]  %s330, 128, %s333, %s322
        $region48: #{tpu_custom_call.1} parent=43 // pred_fallthru
          _
        // Predicated region
        $region49: #{tpu_custom_call.1} parent=43 // pred_check
          %p336 = pneg %p69
        $region50: #{tpu_custom_call.1} parent=43 // pred_check_branch
          %338 = sbr.rel (%p336) target = $region52
        $region51: #{tpu_custom_call.1} parent=43 // pred_region
          %p339 = scmp.lt.s32.totalorder %s23, 1
          %s340 = scalar_select %p339, %s23, 1
          %s341 = scalar_lea.vmem %s1, %s340
        $region52: #{tpu_custom_call.1} parent=43 // pred_fallthru
          _
      $region44: #{tpu_custom_call.1} parent=5 // pred_fallthru
        _
      %p342 = scmp.le.s32.totalorder 1, %s23
      %p343 = scmp.lt.s32.totalorder %s23, 3
      %p344 = pnand %p342, %p343
      %p345 = pneg %p344
      // Predicated region
      $region53: #{tpu_custom_call.1} parent=5 // pred_check
        _
      $region54: #{tpu_custom_call.1} parent=5 // pred_check_branch
        %347 = sbr.rel (%p344) target = $region56
      $region55: #{tpu_custom_call.1} parent=5 // pred_region
        %s348 = ssub.s32 %s23, 1
        %s349 = sand.u32 %s36, 1
        %s350 = scalar_lea.sflag [#allocation3], %s349
        %s351 = sand.u32 %s36, 1
        %s352 = smul.addr %s351, 8
        %s353 = scalar_lea.vmem [#allocation2], %s352
        // Predicated region
        $region57: #{tpu_custom_call.1} parent=55 // pred_check
          %p354 = pneg %p49
        $region58: #{tpu_custom_call.1} parent=55 // pred_check_branch
          %356 = sbr.rel (%p354) target = $region60
        $region59: #{tpu_custom_call.1} parent=55 // pred_region
          %357 = dma.done %s350, 128
        $region60: #{tpu_custom_call.1} parent=55 // pred_fallthru
          _
        // Predicated region
        $region61: #{tpu_custom_call.1} parent=55 // pred_check
          %p358 = pneg %p96
        $region62: #{tpu_custom_call.1} parent=55 // pred_check_branch
          %360 = sbr.rel (%p358) target = $region64
        $region63: #{tpu_custom_call.1} parent=55 // pred_region
          %361 = dma.done [#allocation6], 512
        $region64: #{tpu_custom_call.1} parent=55 // pred_fallthru
          _
        // Predicated region
        $region65: #{tpu_custom_call.1} parent=55 // pred_check
          %p362 = pneg %p117
        $region66: #{tpu_custom_call.1} parent=55 // pred_check_branch
          %364 = sbr.rel (%p362) target = $region68
        $region67: #{tpu_custom_call.1} parent=55 // pred_region
          %365 = dma.done [#allocation6], 512
        $region68: #{tpu_custom_call.1} parent=55 // pred_fallthru
          _
        // Predicated region
        $region69: #{tpu_custom_call.1} parent=55 // pred_check
          %p366 = pneg %p138
        $region70: #{tpu_custom_call.1} parent=55 // pred_check_branch
          %368 = sbr.rel (%p366) target = $region72
        $region71: #{tpu_custom_call.1} parent=55 // pred_region
          %369 = dma.done [#allocation9], 512
        $region72: #{tpu_custom_call.1} parent=55 // pred_fallthru
          _
        %s370 = sand.u32 %s36, 1
        %s371 = scalar_lea.sflag [#allocation3], %s370
        %s372 = sand.u32 %s36, 1
        %s373 = smul.addr %s372, 8
        %s374 = scalar_lea.vmem [#allocation2], %s373
        %p375 = pneg %p49
        %p376 = pneg %p46
        %p377 = scmp.lt.s32.totalorder %s28, 1
        %s378 = scalar_select %p377, %s28, 1
        %s379 = scalar_lea.vmem %s1, %s378
        %p380 = pneg %p75
        %p381 = pneg %p72
        %p382 = pneg %p96
        %p383 = pneg %p93
        %p384 = pneg %p117
        %p385 = pneg %p114
        %p386 = pneg %p138
        %p387 = pneg %p135
        %p388 = pneg %p159
        %p389 = pneg %p156
        %p390 = pneg %p180
        %p391 = pneg %p177
        %p392 = pneg %p201
        %p393 = pneg %p198
        %p394 = pneg %p222
        %p395 = pneg %p219
        %p396 = pneg %p248
        %p397 = pneg %p245
        %s398 = sand.u32 %s235, 1
        %s399 = scalar_lea.sflag [#allocation4], %s398
        %s400 = sand.u32 %s235, 1
        %s401 = scalar_lea.vmem [#allocation10], %s400
        %p402 = scmp.lt.s32.totalorder %s28, 1
        %s403 = scalar_select %p402, %s28, 1
        %s404 = scalar_lea.vmem %s1, %s403
        %v405 = vld [vmem:[%s353] sm:$0xff]
        %v406 = vld [vmem:[%s404] sm:$0x1]
        %v407 = vld [vmem:[#allocation5] sm:$0xff]
        %v408 = vld [vmem:[#allocation5 + $0x8] sm:$0xff]
        %v409 = vld [vmem:[#allocation5 + $0x10] sm:$0xff]
        %v410 = vld [vmem:[#allocation5 + $0x18] sm:$0xff]
        %vm411 = vcmask 261120
        %v413 = vsel %vm411, %v406, 0
        %415 = vmatprep.subr.mxu0 0.0
        %416 = vmatpush1.msra.mxu0 0.0
        %417 = vmatprep.subr.mxu0 0.0
        %418 = vmatpush1.msra.mxu0 0.0
        %419 = vmatprep.subr.mxu0 0.0
        %420 = vmatpush1.msra.mxu0 0.0
        %421 = vmatprep.subr.mxu0 0.0
        %422 = vmatpush1.msra.mxu0 0.0
        %423 = vmatprep.subr.mxu0 0.0
        %424 = vmatpush1.msra.mxu0 0.0
        %425 = vmatprep.subr.mxu0 0.0
        %426 = vmatpush1.msra.mxu0 0.0
        %427 = vmatprep.subr.mxu0 0.0
        %428 = vmatpush1.msra.mxu0 0.0
        %429 = vmatprep.subr.mxu0 0.0
        %430 = vmatpush1.msra.mxu0 0.0
        %431 = vmatprep.subr.mxu0 0.0
        %432 = vmatpush1.msra.mxu0 0.0
        %433 = vmatprep.subr.mxu0 0.0
        %434 = vmatpush1.msra.mxu0 0.0
        %435 = vmatprep.subr.mxu0 0.0
        %436 = vmatpush1.msra.mxu0 0.0
        %437 = vmatprep.subr.mxu0 0.0
        %438 = vmatpush1.msra.mxu0 0.0
        %439 = vmatprep.subr.mxu0 0.0
        %440 = vmatpush1.msra.mxu0 %v410
        %441 = vmatprep.subr.mxu0 0.0
        %442 = vmatpush1.msra.mxu0 %v409
        %443 = vmatprep.subr.mxu0 0.0
        %444 = vmatpush1.msra.mxu0 %v408
        %445 = vmatprep.subr.mxu0 0.0
        %446 = vmatpush1.msra.mxu0 %v407
        %447 = vmatprep.subr.mxu0 0.0
        %448 = vmatpush2.msra.mxu0 0.0
        %449 = vmatprep.subr.mxu0 0.0
        %450 = vmatpush2.msra.mxu0 0.0
        %451 = vmatprep.subr.mxu0 0.0
        %452 = vmatpush2.msra.mxu0 0.0
        %453 = vmatprep.subr.mxu0 0.0
        %454 = vmatpush2.msra.mxu0 0.0
        %455 = vmatprep.subr.mxu0 0.0
        %456 = vmatpush2.msra.mxu0 0.0
        %457 = vmatprep.subr.mxu0 0.0
        %458 = vmatpush2.msra.mxu0 0.0
        %459 = vmatprep.subr.mxu0 0.0
        %460 = vmatpush2.msra.mxu0 0.0
        %461 = vmatprep.subr.mxu0 0.0
        %462 = vmatpush2.msra.mxu0 0.0
        %463 = vmatprep.subr.mxu0 0.0
        %464 = vmatpush2.msra.mxu0 0.0
        %465 = vmatprep.subr.mxu0 0.0
        %466 = vmatpush2.msra.mxu0 0.0
        %467 = vmatprep.subr.mxu0 0.0
        %468 = vmatpush2.msra.mxu0 0.0
        %469 = vmatprep.subr.mxu0 0.0
        %470 = vmatpush2.msra.mxu0 0.0
        %471 = vmatprep.subr.mxu0 0.0
        %472 = vmatpush2.msra.mxu0 0.0
        %473 = vmatprep.subr.mxu0 0.0
        %474 = vmatpush2.msra.mxu0 0.0
        %475 = vmatprep.subr.mxu0 0.0
        %476 = vmatpush2.msra.mxu0 0.0
        %477 = vmatprep.subr.mxu0 0.0
        %478 = vmatpush2.msra.mxu0 0.0
        %479 = vmatprep.mubr.f32.mxu0 0.0
        %480 = vmatmul.mubr.f32.gmra.mxu0 %v413
        %v481 = vpop.f32.mrf.mxu0
        %v482 = vadd.f32 0.0, %v481
        %v483 = vpop.f32.mrf.mxu0
        %484 = vdwg.mxu0
        %v485 = vld [vmem:[#allocation7] sm:$0xff]
        %v486 = vld [vmem:[#allocation7 + $0x8] sm:$0xff]
        %v487 = vld [vmem:[#allocation7 + $0x10] sm:$0xff]
        %v488 = vld [vmem:[#allocation7 + $0x18] sm:$0xff]
        %v490 = vsel %vm411, %v405, 0
        %492 = vmatprep.subr.mxu0 0.0
        %493 = vmatpush1.msra.mxu0 0.0
        %494 = vmatprep.subr.mxu0 0.0
        %495 = vmatpush1.msra.mxu0 0.0
        %496 = vmatprep.subr.mxu0 0.0
        %497 = vmatpush1.msra.mxu0 0.0
        %498 = vmatprep.subr.mxu0 0.0
        %499 = vmatpush1.msra.mxu0 0.0
        %500 = vmatprep.subr.mxu0 0.0
        %501 = vmatpush1.msra.mxu0 0.0
        %502 = vmatprep.subr.mxu0 0.0
        %503 = vmatpush1.msra.mxu0 0.0
        %504 = vmatprep.subr.mxu0 0.0
        %505 = vmatpush1.msra.mxu0 0.0
        %506 = vmatprep.subr.mxu0 0.0
        %507 = vmatpush1.msra.mxu0 0.0
        %508 = vmatprep.subr.mxu0 0.0
        %509 = vmatpush1.msra.mxu0 0.0
        %510 = vmatprep.subr.mxu0 0.0
        %511 = vmatpush1.msra.mxu0 0.0
        %512 = vmatprep.subr.mxu0 0.0
        %513 = vmatpush1.msra.mxu0 0.0
        %514 = vmatprep.subr.mxu0 0.0
        %515 = vmatpush1.msra.mxu0 0.0
        %516 = vmatprep.subr.mxu0 0.0
        %517 = vmatpush1.msra.mxu0 %v488
        %518 = vmatprep.subr.mxu0 0.0
        %519 = vmatpush1.msra.mxu0 %v487
        %520 = vmatprep.subr.mxu0 0.0
        %521 = vmatpush1.msra.mxu0 %v486
        %522 = vmatprep.subr.mxu0 0.0
        %523 = vmatpush1.msra.mxu0 %v485
        %524 = vmatprep.subr.mxu0 0.0
        %525 = vmatpush2.msra.mxu0 0.0
        %526 = vmatprep.subr.mxu0 0.0
        %527 = vmatpush2.msra.mxu0 0.0
        %528 = vmatprep.subr.mxu0 0.0
        %529 = vmatpush2.msra.mxu0 0.0
        %530 = vmatprep.subr.mxu0 0.0
        %531 = vmatpush2.msra.mxu0 0.0
        %532 = vmatprep.subr.mxu0 0.0
        %533 = vmatpush2.msra.mxu0 0.0
        %534 = vmatprep.subr.mxu0 0.0
        %535 = vmatpush2.msra.mxu0 0.0
        %536 = vmatprep.subr.mxu0 0.0
        %537 = vmatpush2.msra.mxu0 0.0
        %538 = vmatprep.subr.mxu0 0.0
        %539 = vmatpush2.msra.mxu0 0.0
        %540 = vmatprep.subr.mxu0 0.0
        %541 = vmatpush2.msra.mxu0 0.0
        %542 = vmatprep.subr.mxu0 0.0
        %543 = vmatpush2.msra.mxu0 0.0
        %544 = vmatprep.subr.mxu0 0.0
        %545 = vmatpush2.msra.mxu0 0.0
        %546 = vmatprep.subr.mxu0 0.0
        %547 = vmatpush2.msra.mxu0 0.0
        %548 = vmatprep.subr.mxu0 0.0
        %549 = vmatpush2.msra.mxu0 0.0
        %550 = vmatprep.subr.mxu0 0.0
        %551 = vmatpush2.msra.mxu0 0.0
        %552 = vmatprep.subr.mxu0 0.0
        %553 = vmatpush2.msra.mxu0 0.0
        %554 = vmatprep.subr.mxu0 0.0
        %555 = vmatpush2.msra.mxu0 0.0
        %556 = vmatprep.mubr.f32.mxu0 0.0
        %557 = vmatmul.mubr.f32.gmra.mxu0 %v490
        %v558 = vpop.f32.mrf.mxu0
        %v559 = vadd.f32 0.0, %v558
        %v560 = vpop.f32.mrf.mxu0
        %561 = vdwg.mxu0
        %v562 = vlaneseq
        %v563 = vshrl.u32 %v562, 7
        %v564 = vsub.s32 0, %v563
        %v565 = vrot.slane %v482, %v564
        %v566 = vmul.f32 %v559, %v565
        %v567 = vld [vmem:[%s7] sm:$0xff]
        %v568 = vld [vmem:[%s7 + $0x8] sm:$0xff]
        %v569 = vld [vmem:[%s7 + $0x10] sm:$0xff]
        %v570 = vld [vmem:[%s7 + $0x18] sm:$0xff]
        %v571 = vld [vmem:[%s7 + $0x20] sm:$0xff]
        %v572 = vld [vmem:[%s7 + $0x28] sm:$0xff]
        %v573 = vld [vmem:[%s7 + $0x30] sm:$0xff]
        %v574 = vld [vmem:[%s7 + $0x38] sm:$0xff]
        %vm575 = vcmask 523264
        %v577 = vsel %vm575, %v566, 0
        %579 = vmatprep.subr.mxu0 0.0
        %580 = vmatpush1.msra.mxu0 0.0
        %581 = vmatprep.subr.mxu0 0.0
        %582 = vmatpush1.msra.mxu0 0.0
        %583 = vmatprep.subr.mxu0 0.0
        %584 = vmatpush1.msra.mxu0 0.0
        %585 = vmatprep.subr.mxu0 0.0
        %586 = vmatpush1.msra.mxu0 0.0
        %587 = vmatprep.subr.mxu0 0.0
        %588 = vmatpush1.msra.mxu0 0.0
        %589 = vmatprep.subr.mxu0 0.0
        %590 = vmatpush1.msra.mxu0 0.0
        %591 = vmatprep.subr.mxu0 0.0
        %592 = vmatpush1.msra.mxu0 0.0
        %593 = vmatprep.subr.mxu0 0.0
        %594 = vmatpush1.msra.mxu0 0.0
        %595 = vmatprep.subr.mxu0 0.0
        %596 = vmatpush1.msra.mxu0 %v574
        %597 = vmatprep.subr.mxu0 0.0
        %598 = vmatpush1.msra.mxu0 %v573
        %599 = vmatprep.subr.mxu0 0.0
        %600 = vmatpush1.msra.mxu0 %v572
        %601 = vmatprep.subr.mxu0 0.0
        %602 = vmatpush1.msra.mxu0 %v571
        %603 = vmatprep.subr.mxu0 0.0
        %604 = vmatpush1.msra.mxu0 %v570
        %605 = vmatprep.subr.mxu0 0.0
        %606 = vmatpush1.msra.mxu0 %v569
        %607 = vmatprep.subr.mxu0 0.0
        %608 = vmatpush1.msra.mxu0 %v568
        %609 = vmatprep.subr.mxu0 0.0
        %610 = vmatpush1.msra.mxu0 %v567
        %611 = vmatprep.subr.mxu0 0.0
        %612 = vmatpush2.msra.mxu0 0.0
        %613 = vmatprep.subr.mxu0 0.0
        %614 = vmatpush2.msra.mxu0 0.0
        %615 = vmatprep.subr.mxu0 0.0
        %616 = vmatpush2.msra.mxu0 0.0
        %617 = vmatprep.subr.mxu0 0.0
        %618 = vmatpush2.msra.mxu0 0.0
        %619 = vmatprep.subr.mxu0 0.0
        %620 = vmatpush2.msra.mxu0 0.0
        %621 = vmatprep.subr.mxu0 0.0
        %622 = vmatpush2.msra.mxu0 0.0
        %623 = vmatprep.subr.mxu0 0.0
        %624 = vmatpush2.msra.mxu0 0.0
        %625 = vmatprep.subr.mxu0 0.0
        %626 = vmatpush2.msra.mxu0 0.0
        %627 = vmatprep.subr.mxu0 0.0
        %628 = vmatpush2.msra.mxu0 0.0
        %629 = vmatprep.subr.mxu0 0.0
        %630 = vmatpush2.msra.mxu0 0.0
        %631 = vmatprep.subr.mxu0 0.0
        %632 = vmatpush2.msra.mxu0 0.0
        %633 = vmatprep.subr.mxu0 0.0
        %634 = vmatpush2.msra.mxu0 0.0
        %635 = vmatprep.subr.mxu0 0.0
        %636 = vmatpush2.msra.mxu0 0.0
        %637 = vmatprep.subr.mxu0 0.0
        %638 = vmatpush2.msra.mxu0 0.0
        %639 = vmatprep.subr.mxu0 0.0
        %640 = vmatpush2.msra.mxu0 0.0
        %641 = vmatprep.subr.mxu0 0.0
        %642 = vmatpush2.msra.mxu0 0.0
        %643 = vmatprep.mubr.f32.mxu0 0.0
        %644 = vmatmul.mubr.f32.gmra.mxu0 %v577
        %v645 = vpop.f32.mrf.mxu0
        %v646 = vadd.f32 0.0, %v645
        %v647 = vpop.f32.mrf.mxu0
        %648 = vdwg.mxu0
        %vm649 = vcmask 31744
        %v650 = vsel %vm649, %v646, -inf
        %v651 = vrot.slane %v650, 4
        %v652 = vmax.f32 %v650, %v651
        %v653 = vrot.slane %v652, 2
        %v654 = vmax.f32 %v652, %v653
        %v655 = vrot.slane %v654, 1
        %v656 = vmax.f32 %v654, %v655
        %v657 = vsub.f32 %v646, %v656
        %v658 = vmul.f32 %v657, 1.442695
        %v659 = vpow.pop %v658
        %v660 = vsel %vm649, %v659, 0.0
        %v661 = vrot.slane %v660, 4
        %v662 = vadd.f32 %v660, %v661
        %v663 = vrot.slane %v662, 2
        %v664 = vadd.f32 %v662, %v663
        %v665 = vrot.slane %v664, 1
        %v666 = vadd.f32 %v664, %v665
        %v667 = vrcp.pop %v666
        %v668 = vmul.f32 %v659, %v667
        %v669 = vld [vmem:[%s8] sm:$0xf]
        %v671 = vsel %vm649, %v668, 0
        %vm673 = vcmask 1043456
        %v675 = vsel %vm673, %v669, 0
        %677 = vmatprep.subr.mxu0 0.0
        %678 = vmatpush1.msra.mxu0 0.0
        %679 = vmatprep.subr.mxu0 0.0
        %680 = vmatpush1.msra.mxu0 0.0
        %681 = vmatprep.subr.mxu0 0.0
        %682 = vmatpush1.msra.mxu0 0.0
        %683 = vmatprep.subr.mxu0 0.0
        %684 = vmatpush1.msra.mxu0 0.0
        %685 = vmatprep.subr.mxu0 0.0
        %686 = vmatpush1.msra.mxu0 0.0
        %687 = vmatprep.subr.mxu0 0.0
        %688 = vmatpush1.msra.mxu0 0.0
        %689 = vmatprep.subr.mxu0 0.0
        %690 = vmatpush1.msra.mxu0 0.0
        %691 = vmatprep.subr.mxu0 0.0
        %692 = vmatpush1.msra.mxu0 0.0
        %693 = vmatprep.subr.mxu0 0.0
        %694 = vmatpush1.msra.mxu0 0.0
        %695 = vmatprep.subr.mxu0 0.0
        %696 = vmatpush1.msra.mxu0 0.0
        %697 = vmatprep.subr.mxu0 0.0
        %698 = vmatpush1.msra.mxu0 0.0
        %699 = vmatprep.subr.mxu0 0.0
        %700 = vmatpush1.msra.mxu0 0.0
        %701 = vmatprep.subr.mxu0 0.0
        %702 = vmatpush1.msra.mxu0 0.0
        %703 = vmatprep.subr.mxu0 0.0
        %704 = vmatpush1.msra.mxu0 0.0
        %705 = vmatprep.subr.mxu0 0.0
        %706 = vmatpush1.msra.mxu0 0.0
        %707 = vmatprep.subr.mxu0 0.0
        %708 = vmatpush1.msra.mxu0 %v675
        %709 = vmatprep.subr.mxu0 0.0
        %710 = vmatpush2.msra.mxu0 0.0
        %711 = vmatprep.subr.mxu0 0.0
        %712 = vmatpush2.msra.mxu0 0.0
        %713 = vmatprep.subr.mxu0 0.0
        %714 = vmatpush2.msra.mxu0 0.0
        %715 = vmatprep.subr.mxu0 0.0
        %716 = vmatpush2.msra.mxu0 0.0
        %717 = vmatprep.subr.mxu0 0.0
        %718 = vmatpush2.msra.mxu0 0.0
        %719 = vmatprep.subr.mxu0 0.0
        %720 = vmatpush2.msra.mxu0 0.0
        %721 = vmatprep.subr.mxu0 0.0
        %722 = vmatpush2.msra.mxu0 0.0
        %723 = vmatprep.subr.mxu0 0.0
        %724 = vmatpush2.msra.mxu0 0.0
        %725 = vmatprep.subr.mxu0 0.0
        %726 = vmatpush2.msra.mxu0 0.0
        %727 = vmatprep.subr.mxu0 0.0
        %728 = vmatpush2.msra.mxu0 0.0
        %729 = vmatprep.subr.mxu0 0.0
        %730 = vmatpush2.msra.mxu0 0.0
        %731 = vmatprep.subr.mxu0 0.0
        %732 = vmatpush2.msra.mxu0 0.0
        %733 = vmatprep.subr.mxu0 0.0
        %734 = vmatpush2.msra.mxu0 0.0
        %735 = vmatprep.subr.mxu0 0.0
        %736 = vmatpush2.msra.mxu0 0.0
        %737 = vmatprep.subr.mxu0 0.0
        %738 = vmatpush2.msra.mxu0 0.0
        %739 = vmatprep.subr.mxu0 0.0
        %740 = vmatpush2.msra.mxu0 0.0
        %741 = vmatprep.mubr.f32.mxu0 0.0
        %742 = vmatmul.mubr.f32.gmra.mxu0 %v671
        %v743 = vpop.f32.mrf.mxu0
        %v744 = vadd.f32 0.0, %v743
        %v745 = vpop.f32.mrf.mxu0
        %746 = vdwg.mxu0
        %v747 = vld [vmem:[#allocation8] sm:$0xff]
        %v748 = vld [vmem:[#allocation8 + $0x8] sm:$0xff]
        %v749 = vld [vmem:[#allocation8 + $0x10] sm:$0xff]
        %v750 = vld [vmem:[#allocation8 + $0x18] sm:$0xff]
        %751 = vmatprep.subr.mxu0 0.0
        %752 = vmatpush1.msra.mxu0 0.0
        %753 = vmatprep.subr.mxu0 0.0
        %754 = vmatpush1.msra.mxu0 0.0
        %755 = vmatprep.subr.mxu0 0.0
        %756 = vmatpush1.msra.mxu0 0.0
        %757 = vmatprep.subr.mxu0 0.0
        %758 = vmatpush1.msra.mxu0 0.0
        %759 = vmatprep.subr.mxu0 0.0
        %760 = vmatpush1.msra.mxu0 0.0
        %761 = vmatprep.subr.mxu0 0.0
        %762 = vmatpush1.msra.mxu0 0.0
        %763 = vmatprep.subr.mxu0 0.0
        %764 = vmatpush1.msra.mxu0 0.0
        %765 = vmatprep.subr.mxu0 0.0
        %766 = vmatpush1.msra.mxu0 0.0
        %767 = vmatprep.subr.mxu0 0.0
        %768 = vmatpush1.msra.mxu0 0.0
        %769 = vmatprep.subr.mxu0 0.0
        %770 = vmatpush1.msra.mxu0 0.0
        %771 = vmatprep.subr.mxu0 0.0
        %772 = vmatpush1.msra.mxu0 0.0
        %773 = vmatprep.subr.mxu0 0.0
        %774 = vmatpush1.msra.mxu0 0.0
        %775 = vmatprep.subr.mxu0 0.0
        %776 = vmatpush1.msra.mxu0 %v750
        %777 = vmatprep.subr.mxu0 0.0
        %778 = vmatpush1.msra.mxu0 %v749
        %779 = vmatprep.subr.mxu0 0.0
        %780 = vmatpush1.msra.mxu0 %v748
        %781 = vmatprep.subr.mxu0 0.0
        %782 = vmatpush1.msra.mxu0 %v747
        %783 = vmatprep.subr.mxu0 0.0
        %784 = vmatpush2.msra.mxu0 0.0
        %785 = vmatprep.subr.mxu0 0.0
        %786 = vmatpush2.msra.mxu0 0.0
        %787 = vmatprep.subr.mxu0 0.0
        %788 = vmatpush2.msra.mxu0 0.0
        %789 = vmatprep.subr.mxu0 0.0
        %790 = vmatpush2.msra.mxu0 0.0
        %791 = vmatprep.subr.mxu0 0.0
        %792 = vmatpush2.msra.mxu0 0.0
        %793 = vmatprep.subr.mxu0 0.0
        %794 = vmatpush2.msra.mxu0 0.0
        %795 = vmatprep.subr.mxu0 0.0
        %796 = vmatpush2.msra.mxu0 0.0
        %797 = vmatprep.subr.mxu0 0.0
        %798 = vmatpush2.msra.mxu0 0.0
        %799 = vmatprep.subr.mxu0 0.0
        %800 = vmatpush2.msra.mxu0 0.0
        %801 = vmatprep.subr.mxu0 0.0
        %802 = vmatpush2.msra.mxu0 0.0
        %803 = vmatprep.subr.mxu0 0.0
        %804 = vmatpush2.msra.mxu0 0.0
        %805 = vmatprep.subr.mxu0 0.0
        %806 = vmatpush2.msra.mxu0 0.0
        %807 = vmatprep.subr.mxu0 0.0
        %808 = vmatpush2.msra.mxu0 0.0
        %809 = vmatprep.subr.mxu0 0.0
        %810 = vmatpush2.msra.mxu0 0.0
        %811 = vmatprep.subr.mxu0 0.0
        %812 = vmatpush2.msra.mxu0 0.0
        %813 = vmatprep.subr.mxu0 0.0
        %814 = vmatpush2.msra.mxu0 0.0
        %815 = vmatprep.mubr.f32.mxu0 0.0
        %816 = vmatmul.mubr.f32.gmra.mxu0 %v490
        %v817 = vpop.f32.mrf.mxu0
        %v818 = vadd.f32 0.0, %v817
        %v819 = vpop.f32.mrf.mxu0
        %820 = vdwg.mxu0
        %v821 = vmul.f32 %v744, %v818
        %v822 = vsel %vm575, %v821, 0.0
        %v823 = vrot.slane %v822, 4
        %v824 = vadd.f32 %v822, %v823
        %v825 = vrot.slane %v824, 2
        %v826 = vadd.f32 %v824, %v825
        %v827 = vrot.slane %v826, 1
        %v828 = vadd.f32 %v826, %v827
        %v829 = vld [vmem:[%s5] sm:$0xff]
        %v830 = vld [vmem:[%s5 + $0x8] sm:$0xff]
        %v831 = vld [vmem:[%s5 + $0x10] sm:$0xff]
        %v832 = vld [vmem:[%s5 + $0x18] sm:$0xff]
        %v833 = vld [vmem:[%s5 + $0x20] sm:$0xff]
        %v834 = vld [vmem:[%s5 + $0x28] sm:$0xff]
        %v835 = vld [vmem:[%s5 + $0x30] sm:$0xff]
        %v836 = vld [vmem:[%s5 + $0x38] sm:$0xff]
        %v837 = vld [vmem:[%s6] sm:$0x1]
        %v839 = vsel %vm575, %v828, 0
        %841 = vmatprep.subr.mxu0 0.0
        %842 = vmatpush1.msra.mxu0 0.0
        %843 = vmatprep.subr.mxu0 0.0
        %844 = vmatpush1.msra.mxu0 0.0
        %845 = vmatprep.subr.mxu0 0.0
        %846 = vmatpush1.msra.mxu0 0.0
        %847 = vmatprep.subr.mxu0 0.0
        %848 = vmatpush1.msra.mxu0 0.0
        %849 = vmatprep.subr.mxu0 0.0
        %850 = vmatpush1.msra.mxu0 0.0
        %851 = vmatprep.subr.mxu0 0.0
        %852 = vmatpush1.msra.mxu0 0.0
        %853 = vmatprep.subr.mxu0 0.0
        %854 = vmatpush1.msra.mxu0 0.0
        %855 = vmatprep.subr.mxu0 0.0
        %856 = vmatpush1.msra.mxu0 0.0
        %857 = vmatprep.subr.mxu0 0.0
        %858 = vmatpush1.msra.mxu0 %v836
        %859 = vmatprep.subr.mxu0 0.0
        %860 = vmatpush1.msra.mxu0 %v835
        %861 = vmatprep.subr.mxu0 0.0
        %862 = vmatpush1.msra.mxu0 %v834
        %863 = vmatprep.subr.mxu0 0.0
        %864 = vmatpush1.msra.mxu0 %v833
        %865 = vmatprep.subr.mxu0 0.0
        %866 = vmatpush1.msra.mxu0 %v832
        %867 = vmatprep.subr.mxu0 0.0
        %868 = vmatpush1.msra.mxu0 %v831
        %869 = vmatprep.subr.mxu0 0.0
        %870 = vmatpush1.msra.mxu0 %v830
        %871 = vmatprep.subr.mxu0 0.0
        %872 = vmatpush1.msra.mxu0 %v829
        %873 = vmatprep.subr.mxu0 0.0
        %874 = vmatpush2.msra.mxu0 0.0
        %875 = vmatprep.subr.mxu0 0.0
        %876 = vmatpush2.msra.mxu0 0.0
        %877 = vmatprep.subr.mxu0 0.0
        %878 = vmatpush2.msra.mxu0 0.0
        %879 = vmatprep.subr.mxu0 0.0
        %880 = vmatpush2.msra.mxu0 0.0
        %881 = vmatprep.subr.mxu0 0.0
        %882 = vmatpush2.msra.mxu0 0.0
        %883 = vmatprep.subr.mxu0 0.0
        %884 = vmatpush2.msra.mxu0 0.0
        %885 = vmatprep.subr.mxu0 0.0
        %886 = vmatpush2.msra.mxu0 0.0
        %887 = vmatprep.subr.mxu0 0.0
        %888 = vmatpush2.msra.mxu0 0.0
        %889 = vmatprep.subr.mxu0 0.0
        %890 = vmatpush2.msra.mxu0 0.0
        %891 = vmatprep.subr.mxu0 0.0
        %892 = vmatpush2.msra.mxu0 0.0
        %893 = vmatprep.subr.mxu0 0.0
        %894 = vmatpush2.msra.mxu0 0.0
        %895 = vmatprep.subr.mxu0 0.0
        %896 = vmatpush2.msra.mxu0 0.0
        %897 = vmatprep.subr.mxu0 0.0
        %898 = vmatpush2.msra.mxu0 0.0
        %899 = vmatprep.subr.mxu0 0.0
        %900 = vmatpush2.msra.mxu0 0.0
        %901 = vmatprep.subr.mxu0 0.0
        %902 = vmatpush2.msra.mxu0 0.0
        %903 = vmatprep.subr.mxu0 0.0
        %904 = vmatpush2.msra.mxu0 0.0
        %905 = vmatprep.mubr.f32.mxu0 0.0
        %906 = vmatmul.mubr.f32.gmra.mxu0 %v839
        %v907 = vpop.f32.mrf.mxu0
        %v908 = vadd.f32 %v837, %v907
        %v909 = vpop.f32.mrf.mxu0
        %910 = vdwg.mxu0
        %911 = vst [vmem:[%s401] sm:$0x1] %v908
        %s912 = sand.u32 %s235, 1
        %s913 = scalar_lea.sflag [#allocation4], %s912
        %s914 = sand.u32 %s235, 1
        %s915 = scalar_lea.vmem [#allocation10], %s914
        // Predicated region
        $region73: #{tpu_custom_call.1} parent=55 // pred_check
          %p916 = pneg %p245
        $region74: #{tpu_custom_call.1} parent=55 // pred_check_branch
          %918 = sbr.rel (%p916) target = $region76
        $region75: #{tpu_custom_call.1} parent=55 // pred_region
          %s920 = ssub.s32 16, 16
          %921 = vsyncadd %s913, %s920
          %s922 = smul.addr %s28, 16
          %s923 = scalar_lea.hbm %s9, %s922
          %s925 = sshll.u32 %s915, 4
          %s926 = int_to_ptr.vmem [resolvable:$true] %s925
          %928 = dma.vmem_to_hbm [thread:$0]  %s926, 16, %s923, %s913
        $region76: #{tpu_custom_call.1} parent=55 // pred_fallthru
          _
      $region56: #{tpu_custom_call.1} parent=5 // pred_fallthru
        _
      %p929 = scmp.le.s32.totalorder 2, %s23
      // Predicated region
      $region77: #{tpu_custom_call.1} parent=5 // pred_check
        %p930 = pneg %p929
      $region78: #{tpu_custom_call.1} parent=5 // pred_check_branch
        %932 = sbr.rel (%p930) target = $region80
      $region79: #{tpu_custom_call.1} parent=5 // pred_region
        %s933 = ssub.s32 %s23, 2
        // Predicated region
        $region81: #{tpu_custom_call.1} parent=79 // pred_check
          %p934 = pneg %p251
        $region82: #{tpu_custom_call.1} parent=79 // pred_check_branch
          %936 = sbr.rel (%p934) target = $region84
        $region83: #{tpu_custom_call.1} parent=79 // pred_region
          %s937 = sand.u32 %s236, 1
          %s938 = scalar_lea.sflag [#allocation4], %s937
          %s939 = sand.u32 %s236, 1
          %s940 = scalar_lea.vmem [#allocation10], %s939
          %941 = dma.done %s938, 16
        $region84: #{tpu_custom_call.1} parent=79 // pred_fallthru
          _
      $region80: #{tpu_custom_call.1} parent=5 // pred_fallthru
        _
    $region6: #{tpu_custom_call.1} parent=1 // loop_footer
      %s27 = sadd.s32 1, %s23
    $region7: #{tpu_custom_call.1} parent=1 // loop_footer_branch
      %22 = sbr.rel target = $region3
    $region8: #{tpu_custom_call.1} parent=1 // loop_exit
      _
    %942 = vsyncpa [#allocation3], 1
    %s943 = scalar_lea.sflag [#allocation3], 1
    %944 = vsyncpa %s943, 1
    %945 = vsyncpa [#allocation6], 1
    %946 = vsyncpa [#allocation9], 1
    %947 = vsyncpa [#allocation4], 1
    %s948 = scalar_lea.sflag [#allocation4], 1
    %949 = vsyncpa %s948, 1

</llo_original>
